<compile_context>
chip_gen: v6e
topology: v6e:2x2x1
jax: 0.10.0
libtpu: 0.0.40
codegen_flags: <defaults>
</compile_context>

<pallas_src>
import functools
import math

import jax
import jax.numpy as jnp
from jax.experimental import pallas as pl
from jax.experimental.pallas import tpu as pltpu

_LANES = 128          # lane-dense padded class width (>= num_classes)
_NEG_BIG = -1e30      # bias padding for fake classes -> exp() underflows to 0
_SQRT1_2 = 0.7071067811865476


def _round_up(x, m):
    return (x + m - 1) // m * m


def _erf(x):
    # Abramowitz & Stegun 7.1.26 (|err| <= 1.5e-7). Uses only mul/add/exp, so
    # it lowers on every TPU generation without relying on a lax.erf rule.
    a1, a2, a3, a4, a5 = (0.254829592, -0.284496736, 1.421413741,
                          -1.453152027, 1.061405429)
    p = 0.3275911
    z = jnp.abs(x)
    t = 1.0 / (1.0 + p * z)
    poly = ((((a5 * t + a4) * t + a3) * t + a2) * t + a1) * t
    y = 1.0 - poly * jnp.exp(-z * z)
    return jnp.where(x < 0, -y, y)


def _gelu_exact(x):
    # nn.GELU default = exact erf form.
    return 0.5 * x * (1.0 + _erf(x * _SQRT1_2))


# ---------------------------------------------------------------------------
# Kernel: one tile of (rows, C) tokens through the whole score_nets MLP.
# ---------------------------------------------------------------------------
def predictor_kernel(x_ref, lng_ref, lnb_ref,
                     w1_ref, b1_ref, w2_ref, b2_ref,
                     w3_ref, b3_ref, w4_ref, b4_ref, o_ref):
    x = x_ref[...].astype(jnp.float32)                    # (T, C)

    # ---- LayerNorm (fused E[x], E[x^2] statistics, f32) ----
    mu = jnp.mean(x, axis=-1, keepdims=True)
    ms = jnp.mean(x * x, axis=-1, keepdims=True)
    var = jnp.maximum(ms - mu * mu, 0.0)
    xn = (x - mu) * jax.lax.rsqrt(var + 1e-5) * lng_ref[...] + lnb_ref[...]

    cd = w1_ref.dtype                                      # MXU streaming dtype
    h = jnp.dot(xn.astype(cd), w1_ref[...],
                preferred_element_type=jnp.float32) + b1_ref[...]
    h = _gelu_exact(h)
    h = jnp.dot(h.astype(cd), w2_ref[...],
                preferred_element_type=jnp.float32) + b2_ref[...]
    h = _gelu_exact(h)
    h = jnp.dot(h.astype(cd), w3_ref[...],
                preferred_element_type=jnp.float32) + b3_ref[...]
    h = _gelu_exact(h)
    z = jnp.dot(h.astype(cd), w4_ref[...],
                preferred_element_type=jnp.float32) + b4_ref[...]   # (T, 128)

    # ---- LogSoftmax over the lane-padded class axis ----
    # Padded lanes carry a -1e30 bias, so exp(z - m) underflows to exactly 0
    # and the real 2-class result is unaffected.
    m = jnp.max(z, axis=-1, keepdims=True)
    e = jnp.exp(z - m)
    lse = m + jnp.log(jnp.sum(e, axis=-1, keepdims=True))
    o_ref[...] = (z - lse).astype(o_ref.dtype)


# ---------------------------------------------------------------------------
# Wrapper
# ---------------------------------------------------------------------------
def predictor_forward(x, params, *, compute_dtype=jnp.float32,
                      rows_per_tile=256, num_classes=2):
    """x: (2, B, N, C) -> [log_probs_0, log_probs_1], each (B, N, num_classes)."""
    S, B, N, C = x.shape
    assert S == 2, "PredictorLG.forward indexes x[0] and x[1]"

    rows = S * B * N
    tile = rows_per_tile if rows >= rows_per_tile else _round_up(rows, 8)
    rows_p = _round_up(rows, tile)

    xf = x.reshape(rows, C).astype(compute_dtype)
    if rows_p != rows:
        xf = jnp.pad(xf, ((0, rows_p - rows), (0, 0)))

    # 2-D, lane-friendly parameter layout (torch Linear weights pre-transposed
    # to (in, out)); biases / LN params stay f32.
    lng = params["ln_g"].reshape(1, C).astype(jnp.float32)
    lnb = params["ln_b"].reshape(1, C).astype(jnp.float32)
    w1 = params["w1"].astype(compute_dtype)
    w2 = params["w2"].astype(compute_dtype)
    w3 = params["w3"].astype(compute_dtype)
    b1 = params["b1"].reshape(1, -1).astype(jnp.float32)
    b2 = params["b2"].reshape(1, -1).astype(jnp.float32)
    b3 = params["b3"].reshape(1, -1).astype(jnp.float32)
    # Final layer padded to a full 128-lane slab -> lane-dense output stores.
    c4 = params["w4"].shape[0]
    w4 = jnp.zeros((c4, _LANES), compute_dtype).at[:, :num_classes].set(
        params["w4"].astype(compute_dtype))
    b4 = jnp.full((1, _LANES), _NEG_BIG, jnp.float32).at[0, :num_classes].set(
        params["b4"].astype(jnp.float32))

    weights = [lng, lnb, w1, b1, w2, b2, w3, b3, w4, b4]

    def w_spec(w):
        nd = w.ndim
        return pl.BlockSpec(w.shape, lambda r, _nd=nd: (0,) * _nd)

    out = pl.pallas_call(
        predictor_kernel,
        out_shape=jax.ShapeDtypeStruct((rows_p, _LANES), jnp.float32),
        grid_spec=pltpu.PrefetchScalarGridSpec(
            num_scalar_prefetch=0,
            grid=(rows_p // tile,),
            in_specs=[pl.BlockSpec((tile, C), lambda r: (r, 0))]
                     + [w_spec(w) for w in weights],
            out_specs=pl.BlockSpec((tile, _LANES), lambda r: (r, 0)),
        ),
        compiler_params=pltpu.CompilerParams(
            dimension_semantics=("parallel",),
            vmem_limit_bytes=32 * 1024 * 1024,
        ),
    )(xf, *weights)

    out = out[:rows, :num_classes].reshape(S, B, N, num_classes)
    return [out[0], out[1]]


# ---------------------------------------------------------------------------
# Deterministic synthetic parameters (mirrors the module's shapes)
# ---------------------------------------------------------------------------
def make_predictor_params(key, embed_dim):
    c, c2, c4 = embed_dim, embed_dim // 2, embed_dim // 4
    ks = jax.random.split(key, 8)
    init = lambda k, shape: jax.random.normal(k, shape, jnp.float32) * 0.02
    return dict(
        ln_g=jnp.ones((c,), jnp.float32),
        ln_b=jnp.zeros((c,), jnp.float32),
        w1=init(ks[0], (c, c)),    b1=init(ks[1], (c,)),
        w2=init(ks[2], (c, c2)),   b2=init(ks[3], (c2,)),
        w3=init(ks[4], (c2, c4)),  b3=init(ks[5], (c4,)),
        w4=init(ks[6], (c4, 2)),   b4=init(ks[7], (2,)),
    )


# ---------------------------------------------------------------------------
# Pure-JAX reference (same math as the PyTorch module)
# ---------------------------------------------------------------------------
def predictor_ref(x, p):
    def ln(v, g, b, eps=1e-5):
        mu = v.mean(-1, keepdims=True)
        var = ((v - mu) ** 2).mean(-1, keepdims=True)
        return (v - mu) / jnp.sqrt(var + eps) * g + b

    out = []
    for i in range(2):
        h = ln(x[i], p["ln_g"], p["ln_b"])
        h = jax.nn.gelu(h @ p["w1"] + p["b1"], approximate=False)
        h = jax.nn.gelu(h @ p["w2"] + p["b2"], approximate=False)
        h = jax.nn.gelu(h @ p["w3"] + p["b3"], approximate=False)
        z = h @ p["w4"] + p["b4"]
        out.append(jax.nn.log_softmax(z, axis=-1))
    return out


if __name__ == "__main__":
    S, B, N, C = 2, 2, 16, 64      # two streams, batch 2, 16 tokens, embed 64

    key = jax.random.PRNGKey(0)
    kx, kp = jax.random.split(key)
    x = jax.random.normal(kx, (S, B, N, C), jnp.float32)
    params = make_predictor_params(kp, C)

    ref = predictor_ref(x, params)

    # f32 path (tight check)
    out = predictor_forward(x, params, compute_dtype=jnp.float32)
    out = jax.block_until_ready(out)
    for o, r in zip(out, ref):
        assert o.shape == (B, N, 2)
        assert jnp.allclose(o, r, atol=5e-3, rtol=5e-3), "f32 mismatch vs reference"

    # bf16 streaming path (f32 MXU accumulation) — performance configuration.
    out_bf16 = predictor_forward(x, params, compute_dtype=jnp.bfloat16)
    out_bf16 = jax.block_until_ready(out_bf16)
    for o, r in zip(out_bf16, ref):
        assert jnp.allclose(o, r, atol=5e-2, rtol=5e-2), "bf16 mismatch vs reference"

    print("KERNEL_OK")
</pallas_src>

<mosaic_0001>
module attributes {stable_mosaic.version = 11 : i64} {
  func.func @predictor_kernel(%arg0: i32, %arg1: memref<64x64xf32, #tpu.memory_space<vmem>>, %arg2: memref<1x64xf32, #tpu.memory_space<vmem>>, %arg3: memref<1x64xf32, #tpu.memory_space<vmem>>, %arg4: memref<64x64xf32, #tpu.memory_space<vmem>>, %arg5: memref<1x64xf32, #tpu.memory_space<vmem>>, %arg6: memref<64x32xf32, #tpu.memory_space<vmem>>, %arg7: memref<1x32xf32, #tpu.memory_space<vmem>>, %arg8: memref<32x16xf32, #tpu.memory_space<vmem>>, %arg9: memref<1x16xf32, #tpu.memory_space<vmem>>, %arg10: memref<16x128xf32, #tpu.memory_space<vmem>>, %arg11: memref<1x128xf32, #tpu.memory_space<vmem>>, %arg12: memref<64x128xf32, #tpu.memory_space<vmem>>) attributes {dimension_semantics = [#tpu.dimension_semantics<parallel>], iteration_bounds = array<i64: 1>, scalar_prefetch = 0 : i64, scratch_operands = 0 : i64, tpu.core_type = #tpu.core_type<tc>, window_params = [{transform_indices = @transform_0, window_bounds = array<i64: 64, 64>}, {pipeline_mode = #tpu.pipeline_mode<synchronous>, transform_indices = @transform_1, window_bounds = array<i64: 1, 64>}, {pipeline_mode = #tpu.pipeline_mode<synchronous>, transform_indices = @transform_2, window_bounds = array<i64: 1, 64>}, {pipeline_mode = #tpu.pipeline_mode<synchronous>, transform_indices = @transform_3, window_bounds = array<i64: 64, 64>}, {pipeline_mode = #tpu.pipeline_mode<synchronous>, transform_indices = @transform_4, window_bounds = array<i64: 1, 64>}, {pipeline_mode = #tpu.pipeline_mode<synchronous>, transform_indices = @transform_5, window_bounds = array<i64: 64, 32>}, {pipeline_mode = #tpu.pipeline_mode<synchronous>, transform_indices = @transform_6, window_bounds = array<i64: 1, 32>}, {pipeline_mode = #tpu.pipeline_mode<synchronous>, transform_indices = @transform_7, window_bounds = array<i64: 32, 16>}, {pipeline_mode = #tpu.pipeline_mode<synchronous>, transform_indices = @transform_8, window_bounds = array<i64: 1, 16>}, {pipeline_mode = #tpu.pipeline_mode<synchronous>, transform_indices = @transform_9, window_bounds = array<i64: 16, 128>}, {pipeline_mode = #tpu.pipeline_mode<synchronous>, transform_indices = @transform_10, window_bounds = array<i64: 1, 128>}, {transform_indices = @transform_11, window_bounds = array<i64: 64, 128>}]} {
    %c0 = arith.constant 0 : index
    %c0_0 = arith.constant 0 : index
    %0 = vector.load %arg1[%c0, %c0_0] : memref<64x64xf32, #tpu.memory_space<vmem>>, vector<64x64xf32>
    %cst = arith.constant dense<0.000000e+00> : vector<64xf32>
    %1 = vector.multi_reduction <add>, %0, %cst [1] : vector<64x64xf32> to vector<64xf32>
    %2 = vector.shape_cast %1 : vector<64xf32> to vector<64x1xf32>
    %cst_1 = arith.constant 6.400000e+01 : f32
    %3 = vector.broadcast %cst_1 : f32 to vector<64x1xf32>
    %4 = arith.divf %2, %3 : vector<64x1xf32>
    %5 = arith.mulf %0, %0 : vector<64x64xf32>
    %cst_2 = arith.constant dense<0.000000e+00> : vector<64xf32>
    %6 = vector.multi_reduction <add>, %5, %cst_2 [1] : vector<64x64xf32> to vector<64xf32>
    %7 = vector.shape_cast %6 : vector<64xf32> to vector<64x1xf32>
    %cst_3 = arith.constant 6.400000e+01 : f32
    %8 = vector.broadcast %cst_3 : f32 to vector<64x1xf32>
    %9 = arith.divf %7, %8 : vector<64x1xf32>
    %10 = arith.mulf %4, %4 : vector<64x1xf32>
    %11 = arith.subf %9, %10 : vector<64x1xf32>
    %cst_4 = arith.constant 0.000000e+00 : f32
    %12 = vector.broadcast %cst_4 : f32 to vector<64x1xf32>
    %13 = arith.maximumf %11, %12 : vector<64x1xf32>
    %14 = vector.broadcast %4 : vector<64x1xf32> to vector<64x64xf32>
    %15 = arith.subf %0, %14 : vector<64x64xf32>
    %cst_5 = arith.constant 9.99999974E-6 : f32
    %16 = vector.broadcast %cst_5 : f32 to vector<64x1xf32>
    %17 = arith.addf %13, %16 : vector<64x1xf32>
    %18 = math.rsqrt %17 : vector<64x1xf32>
    %19 = vector.broadcast %18 : vector<64x1xf32> to vector<64x64xf32>
    %20 = arith.mulf %15, %19 : vector<64x64xf32>
    %c0_6 = arith.constant 0 : index
    %c0_7 = arith.constant 0 : index
    %21 = vector.load %arg2[%c0_6, %c0_7] : memref<1x64xf32, #tpu.memory_space<vmem>>, vector<1x64xf32>
    %22 = vector.broadcast %21 : vector<1x64xf32> to vector<64x64xf32>
    %23 = arith.mulf %20, %22 : vector<64x64xf32>
    %c0_8 = arith.constant 0 : index
    %c0_9 = arith.constant 0 : index
    %24 = vector.load %arg3[%c0_8, %c0_9] : memref<1x64xf32, #tpu.memory_space<vmem>>, vector<1x64xf32>
    %25 = vector.broadcast %24 : vector<1x64xf32> to vector<64x64xf32>
    %26 = arith.addf %23, %25 : vector<64x64xf32>
    %c0_10 = arith.constant 0 : index
    %c0_11 = arith.constant 0 : index
    %27 = vector.load %arg4[%c0_10, %c0_11] : memref<64x64xf32, #tpu.memory_space<vmem>>, vector<64x64xf32>
    %cst_12 = arith.constant dense<0.000000e+00> : vector<64x64xf32>
    %28 = tpu.matmul %26, %27, %cst_12 {dimension_numbers = #tpu.dot_dimension_numbers<[1], [0], [0], [1], [0, 0, 1, 1], [], []>} : vector<64x64xf32>, vector<64x64xf32>, vector<64x64xf32> -> vector<64x64xf32>
    %c0_13 = arith.constant 0 : index
    %c0_14 = arith.constant 0 : index
    %29 = vector.load %arg5[%c0_13, %c0_14] : memref<1x64xf32, #tpu.memory_space<vmem>>, vector<1x64xf32>
    %30 = vector.broadcast %29 : vector<1x64xf32> to vector<64x64xf32>
    %31 = arith.addf %28, %30 : vector<64x64xf32>
    %cst_15 = arith.constant 5.000000e-01 : f32
    %32 = vector.broadcast %cst_15 : f32 to vector<64x64xf32>
    %33 = arith.mulf %32, %31 : vector<64x64xf32>
    %cst_16 = arith.constant 0.707106769 : f32
    %34 = vector.broadcast %cst_16 : f32 to vector<64x64xf32>
    %35 = arith.mulf %31, %34 : vector<64x64xf32>
    %36 = math.absf %35 : vector<64x64xf32>
    %cst_17 = arith.constant 0.327591091 : f32
    %37 = vector.broadcast %cst_17 : f32 to vector<64x64xf32>
    %38 = arith.mulf %37, %36 : vector<64x64xf32>
    %cst_18 = arith.constant 1.000000e+00 : f32
    %39 = vector.broadcast %cst_18 : f32 to vector<64x64xf32>
    %40 = arith.addf %39, %38 : vector<64x64xf32>
    %cst_19 = arith.constant 1.000000e+00 : f32
    %41 = vector.broadcast %cst_19 : f32 to vector<64x64xf32>
    %42 = arith.divf %41, %40 : vector<64x64xf32>
    %cst_20 = arith.constant 1.06140542 : f32
    %43 = vector.broadcast %cst_20 : f32 to vector<64x64xf32>
    %44 = arith.mulf %43, %42 : vector<64x64xf32>
    %cst_21 = arith.constant -1.45315206 : f32
    %45 = vector.broadcast %cst_21 : f32 to vector<64x64xf32>
    %46 = arith.addf %44, %45 : vector<64x64xf32>
    %47 = arith.mulf %46, %42 : vector<64x64xf32>
    %cst_22 = arith.constant 1.42141378 : f32
    %48 = vector.broadcast %cst_22 : f32 to vector<64x64xf32>
    %49 = arith.addf %47, %48 : vector<64x64xf32>
    %50 = arith.mulf %49, %42 : vector<64x64xf32>
    %cst_23 = arith.constant -0.284496725 : f32
    %51 = vector.broadcast %cst_23 : f32 to vector<64x64xf32>
    %52 = arith.addf %50, %51 : vector<64x64xf32>
    %53 = arith.mulf %52, %42 : vector<64x64xf32>
    %cst_24 = arith.constant 0.254829586 : f32
    %54 = vector.broadcast %cst_24 : f32 to vector<64x64xf32>
    %55 = arith.addf %53, %54 : vector<64x64xf32>
    %56 = arith.mulf %55, %42 : vector<64x64xf32>
    %cst_25 = arith.constant 0.000000e+00 : f32
    %57 = vector.broadcast %cst_25 : f32 to vector<64x64xf32>
    %58 = arith.subf %57, %36 : vector<64x64xf32>
    %59 = arith.mulf %58, %36 : vector<64x64xf32>
    %60 = math.exp %59 : vector<64x64xf32>
    %61 = arith.mulf %56, %60 : vector<64x64xf32>
    %cst_26 = arith.constant 1.000000e+00 : f32
    %62 = vector.broadcast %cst_26 : f32 to vector<64x64xf32>
    %63 = arith.subf %62, %61 : vector<64x64xf32>
    %cst_27 = arith.constant 0.000000e+00 : f32
    %64 = vector.broadcast %cst_27 : f32 to vector<64x64xf32>
    %65 = arith.cmpf olt, %35, %64 : vector<64x64xf32>
    %cst_28 = arith.constant 0.000000e+00 : f32
    %66 = vector.broadcast %cst_28 : f32 to vector<64x64xf32>
    %67 = arith.subf %66, %63 : vector<64x64xf32>
    %68 = arith.select %65, %67, %63 : vector<64x64xi1>, vector<64x64xf32>
    %cst_29 = arith.constant 1.000000e+00 : f32
    %69 = vector.broadcast %cst_29 : f32 to vector<64x64xf32>
    %70 = arith.addf %69, %68 : vector<64x64xf32>
    %71 = arith.mulf %33, %70 : vector<64x64xf32>
    %c0_30 = arith.constant 0 : index
    %c0_31 = arith.constant 0 : index
    %72 = vector.load %arg6[%c0_30, %c0_31] : memref<64x32xf32, #tpu.memory_space<vmem>>, vector<64x32xf32>
    %cst_32 = arith.constant dense<0.000000e+00> : vector<64x32xf32>
    %73 = tpu.matmul %71, %72, %cst_32 {dimension_numbers = #tpu.dot_dimension_numbers<[1], [0], [0], [1], [0, 0, 1, 1], [], []>} : vector<64x64xf32>, vector<64x32xf32>, vector<64x32xf32> -> vector<64x32xf32>
    %c0_33 = arith.constant 0 : index
    %c0_34 = arith.constant 0 : index
    %74 = vector.load %arg7[%c0_33, %c0_34] : memref<1x32xf32, #tpu.memory_space<vmem>>, vector<1x32xf32>
    %75 = vector.broadcast %74 : vector<1x32xf32> to vector<64x32xf32>
    %76 = arith.addf %73, %75 : vector<64x32xf32>
    %cst_35 = arith.constant 5.000000e-01 : f32
    %77 = vector.broadcast %cst_35 : f32 to vector<64x32xf32>
    %78 = arith.mulf %77, %76 : vector<64x32xf32>
    %cst_36 = arith.constant 0.707106769 : f32
    %79 = vector.broadcast %cst_36 : f32 to vector<64x32xf32>
    %80 = arith.mulf %76, %79 : vector<64x32xf32>
    %81 = math.absf %80 : vector<64x32xf32>
    %cst_37 = arith.constant 0.327591091 : f32
    %82 = vector.broadcast %cst_37 : f32 to vector<64x32xf32>
    %83 = arith.mulf %82, %81 : vector<64x32xf32>
    %cst_38 = arith.constant 1.000000e+00 : f32
    %84 = vector.broadcast %cst_38 : f32 to vector<64x32xf32>
    %85 = arith.addf %84, %83 : vector<64x32xf32>
    %cst_39 = arith.constant 1.000000e+00 : f32
    %86 = vector.broadcast %cst_39 : f32 to vector<64x32xf32>
    %87 = arith.divf %86, %85 : vector<64x32xf32>
    %cst_40 = arith.constant 1.06140542 : f32
    %88 = vector.broadcast %cst_40 : f32 to vector<64x32xf32>
    %89 = arith.mulf %88, %87 : vector<64x32xf32>
    %cst_41 = arith.constant -1.45315206 : f32
    %90 = vector.broadcast %cst_41 : f32 to vector<64x32xf32>
    %91 = arith.addf %89, %90 : vector<64x32xf32>
    %92 = arith.mulf %91, %87 : vector<64x32xf32>
    %cst_42 = arith.constant 1.42141378 : f32
    %93 = vector.broadcast %cst_42 : f32 to vector<64x32xf32>
    %94 = arith.addf %92, %93 : vector<64x32xf32>
    %95 = arith.mulf %94, %87 : vector<64x32xf32>
    %cst_43 = arith.constant -0.284496725 : f32
    %96 = vector.broadcast %cst_43 : f32 to vector<64x32xf32>
    %97 = arith.addf %95, %96 : vector<64x32xf32>
    %98 = arith.mulf %97, %87 : vector<64x32xf32>
    %cst_44 = arith.constant 0.254829586 : f32
    %99 = vector.broadcast %cst_44 : f32 to vector<64x32xf32>
    %100 = arith.addf %98, %99 : vector<64x32xf32>
    %101 = arith.mulf %100, %87 : vector<64x32xf32>
    %cst_45 = arith.constant 0.000000e+00 : f32
    %102 = vector.broadcast %cst_45 : f32 to vector<64x32xf32>
    %103 = arith.subf %102, %81 : vector<64x32xf32>
    %104 = arith.mulf %103, %81 : vector<64x32xf32>
    %105 = math.exp %104 : vector<64x32xf32>
    %106 = arith.mulf %101, %105 : vector<64x32xf32>
    %cst_46 = arith.constant 1.000000e+00 : f32
    %107 = vector.broadcast %cst_46 : f32 to vector<64x32xf32>
    %108 = arith.subf %107, %106 : vector<64x32xf32>
    %cst_47 = arith.constant 0.000000e+00 : f32
    %109 = vector.broadcast %cst_47 : f32 to vector<64x32xf32>
    %110 = arith.cmpf olt, %80, %109 : vector<64x32xf32>
    %cst_48 = arith.constant 0.000000e+00 : f32
    %111 = vector.broadcast %cst_48 : f32 to vector<64x32xf32>
    %112 = arith.subf %111, %108 : vector<64x32xf32>
    %113 = arith.select %110, %112, %108 : vector<64x32xi1>, vector<64x32xf32>
    %cst_49 = arith.constant 1.000000e+00 : f32
    %114 = vector.broadcast %cst_49 : f32 to vector<64x32xf32>
    %115 = arith.addf %114, %113 : vector<64x32xf32>
    %116 = arith.mulf %78, %115 : vector<64x32xf32>
    %c0_50 = arith.constant 0 : index
    %c0_51 = arith.constant 0 : index
    %117 = vector.load %arg8[%c0_50, %c0_51] : memref<32x16xf32, #tpu.memory_space<vmem>>, vector<32x16xf32>
    %cst_52 = arith.constant dense<0.000000e+00> : vector<64x16xf32>
    %118 = tpu.matmul %116, %117, %cst_52 {dimension_numbers = #tpu.dot_dimension_numbers<[1], [0], [0], [1], [0, 0, 1, 1], [], []>} : vector<64x32xf32>, vector<32x16xf32>, vector<64x16xf32> -> vector<64x16xf32>
    %c0_53 = arith.constant 0 : index
    %c0_54 = arith.constant 0 : index
    %119 = vector.load %arg9[%c0_53, %c0_54] : memref<1x16xf32, #tpu.memory_space<vmem>>, vector<1x16xf32>
    %120 = vector.broadcast %119 : vector<1x16xf32> to vector<64x16xf32>
    %121 = arith.addf %118, %120 : vector<64x16xf32>
    %cst_55 = arith.constant 5.000000e-01 : f32
    %122 = vector.broadcast %cst_55 : f32 to vector<64x16xf32>
    %123 = arith.mulf %122, %121 : vector<64x16xf32>
    %cst_56 = arith.constant 0.707106769 : f32
    %124 = vector.broadcast %cst_56 : f32 to vector<64x16xf32>
    %125 = arith.mulf %121, %124 : vector<64x16xf32>
    %126 = math.absf %125 : vector<64x16xf32>
    %cst_57 = arith.constant 0.327591091 : f32
    %127 = vector.broadcast %cst_57 : f32 to vector<64x16xf32>
    %128 = arith.mulf %127, %126 : vector<64x16xf32>
    %cst_58 = arith.constant 1.000000e+00 : f32
    %129 = vector.broadcast %cst_58 : f32 to vector<64x16xf32>
    %130 = arith.addf %129, %128 : vector<64x16xf32>
    %cst_59 = arith.constant 1.000000e+00 : f32
    %131 = vector.broadcast %cst_59 : f32 to vector<64x16xf32>
    %132 = arith.divf %131, %130 : vector<64x16xf32>
    %cst_60 = arith.constant 1.06140542 : f32
    %133 = vector.broadcast %cst_60 : f32 to vector<64x16xf32>
    %134 = arith.mulf %133, %132 : vector<64x16xf32>
    %cst_61 = arith.constant -1.45315206 : f32
    %135 = vector.broadcast %cst_61 : f32 to vector<64x16xf32>
    %136 = arith.addf %134, %135 : vector<64x16xf32>
    %137 = arith.mulf %136, %132 : vector<64x16xf32>
    %cst_62 = arith.constant 1.42141378 : f32
    %138 = vector.broadcast %cst_62 : f32 to vector<64x16xf32>
    %139 = arith.addf %137, %138 : vector<64x16xf32>
    %140 = arith.mulf %139, %132 : vector<64x16xf32>
    %cst_63 = arith.constant -0.284496725 : f32
    %141 = vector.broadcast %cst_63 : f32 to vector<64x16xf32>
    %142 = arith.addf %140, %141 : vector<64x16xf32>
    %143 = arith.mulf %142, %132 : vector<64x16xf32>
    %cst_64 = arith.constant 0.254829586 : f32
    %144 = vector.broadcast %cst_64 : f32 to vector<64x16xf32>
    %145 = arith.addf %143, %144 : vector<64x16xf32>
    %146 = arith.mulf %145, %132 : vector<64x16xf32>
    %cst_65 = arith.constant 0.000000e+00 : f32
    %147 = vector.broadcast %cst_65 : f32 to vector<64x16xf32>
    %148 = arith.subf %147, %126 : vector<64x16xf32>
    %149 = arith.mulf %148, %126 : vector<64x16xf32>
    %150 = math.exp %149 : vector<64x16xf32>
    %151 = arith.mulf %146, %150 : vector<64x16xf32>
    %cst_66 = arith.constant 1.000000e+00 : f32
    %152 = vector.broadcast %cst_66 : f32 to vector<64x16xf32>
    %153 = arith.subf %152, %151 : vector<64x16xf32>
    %cst_67 = arith.constant 0.000000e+00 : f32
    %154 = vector.broadcast %cst_67 : f32 to vector<64x16xf32>
    %155 = arith.cmpf olt, %125, %154 : vector<64x16xf32>
    %cst_68 = arith.constant 0.000000e+00 : f32
    %156 = vector.broadcast %cst_68 : f32 to vector<64x16xf32>
    %157 = arith.subf %156, %153 : vector<64x16xf32>
    %158 = arith.select %155, %157, %153 : vector<64x16xi1>, vector<64x16xf32>
    %cst_69 = arith.constant 1.000000e+00 : f32
    %159 = vector.broadcast %cst_69 : f32 to vector<64x16xf32>
    %160 = arith.addf %159, %158 : vector<64x16xf32>
    %161 = arith.mulf %123, %160 : vector<64x16xf32>
    %c0_70 = arith.constant 0 : index
    %c0_71 = arith.constant 0 : index
    %162 = vector.load %arg10[%c0_70, %c0_71] : memref<16x128xf32, #tpu.memory_space<vmem>>, vector<16x128xf32>
    %cst_72 = arith.constant dense<0.000000e+00> : vector<64x128xf32>
    %163 = tpu.matmul %161, %162, %cst_72 {dimension_numbers = #tpu.dot_dimension_numbers<[1], [0], [0], [1], [0, 0, 1, 1], [], []>} : vector<64x16xf32>, vector<16x128xf32>, vector<64x128xf32> -> vector<64x128xf32>
    %c0_73 = arith.constant 0 : index
    %c0_74 = arith.constant 0 : index
    %164 = vector.load %arg11[%c0_73, %c0_74] : memref<1x128xf32, #tpu.memory_space<vmem>>, vector<1x128xf32>
    %165 = vector.broadcast %164 : vector<1x128xf32> to vector<64x128xf32>
    %166 = arith.addf %163, %165 : vector<64x128xf32>
    %cst_75 = arith.constant dense<0xFF800000> : vector<64xf32>
    %167 = vector.multi_reduction <maximumf>, %166, %cst_75 [1] : vector<64x128xf32> to vector<64xf32>
    %168 = vector.shape_cast %167 : vector<64xf32> to vector<64x1xf32>
    %169 = vector.broadcast %168 : vector<64x1xf32> to vector<64x128xf32>
    %170 = arith.subf %166, %169 : vector<64x128xf32>
    %171 = math.exp %170 : vector<64x128xf32>
    %cst_76 = arith.constant dense<0.000000e+00> : vector<64xf32>
    %172 = vector.multi_reduction <add>, %171, %cst_76 [1] : vector<64x128xf32> to vector<64xf32>
    %173 = vector.shape_cast %172 : vector<64xf32> to vector<64x1xf32>
    %174 = math.log %173 : vector<64x1xf32>
    %175 = arith.addf %168, %174 : vector<64x1xf32>
    %176 = vector.broadcast %175 : vector<64x1xf32> to vector<64x128xf32>
    %177 = arith.subf %166, %176 : vector<64x128xf32>
    %c0_77 = arith.constant 0 : index
    %c0_78 = arith.constant 0 : index
    %178 = vector.load %arg12[%c0_77, %c0_78] : memref<64x128xf32, #tpu.memory_space<vmem>>, vector<64x128xf32>
    tpu.vector_store %arg12[%c0_77, %c0_78], %177 {strides = array<i32>} : memref<64x128xf32, #tpu.memory_space<vmem>>, vector<64x128xf32>,
    return
  }
  func.func @transform_0(%arg0: i32) -> (i32, i32) {
    %c0_i32 = arith.constant 0 : i32
    %c0_i32_0 = arith.constant 0 : i32
    return %arg0, %c0_i32 : i32, i32
  }
  func.func @transform_1(%arg0: i32) -> (i32, i32) {
    %c0_i32 = arith.constant 0 : i32
    %c0_i32_0 = arith.constant 0 : i32
    %c0_i32_1 = arith.constant 0 : i32
    return %c0_i32, %c0_i32_0 : i32, i32
  }
  func.func @transform_2(%arg0: i32) -> (i32, i32) {
    %c0_i32 = arith.constant 0 : i32
    %c0_i32_0 = arith.constant 0 : i32
    %c0_i32_1 = arith.constant 0 : i32
    return %c0_i32, %c0_i32_0 : i32, i32
  }
  func.func @transform_3(%arg0: i32) -> (i32, i32) {
    %c0_i32 = arith.constant 0 : i32
    %c0_i32_0 = arith.constant 0 : i32
    %c0_i32_1 = arith.constant 0 : i32
    return %c0_i32, %c0_i32_0 : i32, i32
  }
  func.func @transform_4(%arg0: i32) -> (i32, i32) {
    %c0_i32 = arith.constant 0 : i32
    %c0_i32_0 = arith.constant 0 : i32
    %c0_i32_1 = arith.constant 0 : i32
    return %c0_i32, %c0_i32_0 : i32, i32
  }
  func.func @transform_5(%arg0: i32) -> (i32, i32) {
    %c0_i32 = arith.constant 0 : i32
    %c0_i32_0 = arith.constant 0 : i32
    %c0_i32_1 = arith.constant 0 : i32
    return %c0_i32, %c0_i32_0 : i32, i32
  }
  func.func @transform_6(%arg0: i32) -> (i32, i32) {
    %c0_i32 = arith.constant 0 : i32
    %c0_i32_0 = arith.constant 0 : i32
    %c0_i32_1 = arith.constant 0 : i32
    return %c0_i32, %c0_i32_0 : i32, i32
  }
  func.func @transform_7(%arg0: i32) -> (i32, i32) {
    %c0_i32 = arith.constant 0 : i32
    %c0_i32_0 = arith.constant 0 : i32
    %c0_i32_1 = arith.constant 0 : i32
    return %c0_i32, %c0_i32_0 : i32, i32
  }
  func.func @transform_8(%arg0: i32) -> (i32, i32) {
    %c0_i32 = arith.constant 0 : i32
    %c0_i32_0 = arith.constant 0 : i32
    %c0_i32_1 = arith.constant 0 : i32
    return %c0_i32, %c0_i32_0 : i32, i32
  }
  func.func @transform_9(%arg0: i32) -> (i32, i32) {
    %c0_i32 = arith.constant 0 : i32
    %c0_i32_0 = arith.constant 0 : i32
    %c0_i32_1 = arith.constant 0 : i32
    return %c0_i32, %c0_i32_0 : i32, i32
  }
  func.func @transform_10(%arg0: i32) -> (i32, i32) {
    %c0_i32 = arith.constant 0 : i32
    %c0_i32_0 = arith.constant 0 : i32
    %c0_i32_1 = arith.constant 0 : i32
    return %c0_i32, %c0_i32_0 : i32, i32
  }
  func.func @transform_11(%arg0: i32) -> (i32, i32) {
    %c0_i32 = arith.constant 0 : i32
    %c0_i32_0 = arith.constant 0 : i32
    return %arg0, %c0_i32 : i32, i32
  }
}

</mosaic_0001>

<llo_original>
// kernel: tpu_custom_call.1
$region0: #{tpu_custom_call.1}
  #allocation0 [shape = 'u32[]', space=smem, size = 0x4, offset = 0x4, fixed_abs, tag = 'smem constant byte address 0x4 - core index']
  #allocation1 [shape = 'u32[144,128]{1,0:T(1,128)}', space=vmem, size = 0x12000, scoped, tag = 'internal scratch']
  %s0 = inlined_call_operand.vmem [shape: f32[64,64], index: 0, kind: input, shape index: {}]
  %s1 = inlined_call_operand.vmem [shape: f32[1,64], index: 1, kind: input, shape index: {}]
  %s2 = inlined_call_operand.vmem [shape: f32[1,64], index: 2, kind: input, shape index: {}]
  %s3 = inlined_call_operand.vmem [shape: f32[64,64], index: 3, kind: input, shape index: {}]
  %s4 = inlined_call_operand.vmem [shape: f32[1,64], index: 4, kind: input, shape index: {}]
  %s5 = inlined_call_operand.vmem [shape: f32[64,32], index: 5, kind: input, shape index: {}]
  %s6 = inlined_call_operand.vmem [shape: f32[1,32], index: 6, kind: input, shape index: {}]
  %s7 = inlined_call_operand.vmem [shape: f32[32,16], index: 7, kind: input, shape index: {}]
  %s8 = inlined_call_operand.vmem [shape: f32[1,16], index: 8, kind: input, shape index: {}]
  %s9 = inlined_call_operand.vmem [shape: f32[16,128], index: 9, kind: input, shape index: {}]
  %s10 = inlined_call_operand.vmem [shape: f32[1,128], index: 10, kind: input, shape index: {}]
  %s11 = inlined_call_operand.hbm [shape: f32[64,128], index: 11, kind: output, shape index: {}]
  %s12 = sld [smem:[#allocation0]]
  $region54: #{tpu_custom_call.1} parent=0
    _
  %s14 = ssub.s32 1, %s12
  %s15 = scalar_select 0, %s14, %s12
  $region1: #{tpu_custom_call.1} parent=0
    #allocation2 [shape = 'u8[32768]{0}', space=vmem, size = 0x8000, scoped, tag = 'output window, operand 0, single buffered']
    #allocation3 [shape = 's32[1]{0}', space=sflag, size = 0x4, scoped, tag = 'scoped memory for tpu_custom_call.1']
    %16 = vsyncpa [#allocation3], 0
    // Predicated region
    $region2: #{tpu_custom_call.1} parent=1 // pred_check
      _
    $region3: #{tpu_custom_call.1} parent=1 // pred_check_branch
      %18 = sbr.rel (0) target = $region5
    $region4: #{tpu_custom_call.1} parent=1 // pred_region
      _
    $region5: #{tpu_custom_call.1} parent=1 // pred_fallthru
      _
    // Predicated region
    $region6: #{tpu_custom_call.1} parent=1 // pred_check
      _
    $region7: #{tpu_custom_call.1} parent=1 // pred_check_branch
      %20 = sbr.rel (0) target = $region9
    $region8: #{tpu_custom_call.1} parent=1 // pred_region
      _
    $region9: #{tpu_custom_call.1} parent=1 // pred_fallthru
      _
    // Predicated region
    $region10: #{tpu_custom_call.1} parent=1 // pred_check
      _
    $region11: #{tpu_custom_call.1} parent=1 // pred_check_branch
      %22 = sbr.rel (0) target = $region13
    $region12: #{tpu_custom_call.1} parent=1 // pred_region
      _
    $region13: #{tpu_custom_call.1} parent=1 // pred_fallthru
      _
    // Predicated region
    $region14: #{tpu_custom_call.1} parent=1 // pred_check
      _
    $region15: #{tpu_custom_call.1} parent=1 // pred_check_branch
      %24 = sbr.rel (0) target = $region17
    $region16: #{tpu_custom_call.1} parent=1 // pred_region
      _
    $region17: #{tpu_custom_call.1} parent=1 // pred_fallthru
      _
    // Predicated region
    $region18: #{tpu_custom_call.1} parent=1 // pred_check
      _
    $region19: #{tpu_custom_call.1} parent=1 // pred_check_branch
      %26 = sbr.rel (0) target = $region21
    $region20: #{tpu_custom_call.1} parent=1 // pred_region
      _
    $region21: #{tpu_custom_call.1} parent=1 // pred_fallthru
      _
    // Predicated region
    $region22: #{tpu_custom_call.1} parent=1 // pred_check
      _
    $region23: #{tpu_custom_call.1} parent=1 // pred_check_branch
      %28 = sbr.rel (0) target = $region25
    $region24: #{tpu_custom_call.1} parent=1 // pred_region
      _
    $region25: #{tpu_custom_call.1} parent=1 // pred_fallthru
      _
    // Predicated region
    $region26: #{tpu_custom_call.1} parent=1 // pred_check
      _
    $region27: #{tpu_custom_call.1} parent=1 // pred_check_branch
      %30 = sbr.rel (0) target = $region29
    $region28: #{tpu_custom_call.1} parent=1 // pred_region
      _
    $region29: #{tpu_custom_call.1} parent=1 // pred_fallthru
      _
    // Predicated region
    $region30: #{tpu_custom_call.1} parent=1 // pred_check
      _
    $region31: #{tpu_custom_call.1} parent=1 // pred_check_branch
      %32 = sbr.rel (0) target = $region33
    $region32: #{tpu_custom_call.1} parent=1 // pred_region
      _
    $region33: #{tpu_custom_call.1} parent=1 // pred_fallthru
      _
    // Predicated region
    $region34: #{tpu_custom_call.1} parent=1 // pred_check
      _
    $region35: #{tpu_custom_call.1} parent=1 // pred_check_branch
      %34 = sbr.rel (0) target = $region37
    $region36: #{tpu_custom_call.1} parent=1 // pred_region
      _
    $region37: #{tpu_custom_call.1} parent=1 // pred_fallthru
      _
    // Predicated region
    $region38: #{tpu_custom_call.1} parent=1 // pred_check
      _
    $region39: #{tpu_custom_call.1} parent=1 // pred_check_branch
      %36 = sbr.rel (0) target = $region41
    $region40: #{tpu_custom_call.1} parent=1 // pred_region
      _
    $region41: #{tpu_custom_call.1} parent=1 // pred_fallthru
      _
    // Predicated region
    $region42: #{tpu_custom_call.1} parent=1 // pred_check
      _
    $region43: #{tpu_custom_call.1} parent=1 // pred_check_branch
      %38 = sbr.rel (0) target = $region45
    $region44: #{tpu_custom_call.1} parent=1 // pred_region
      _
    $region45: #{tpu_custom_call.1} parent=1 // pred_fallthru
      _
    %v39 = vld [vmem:[%s0] sm:$0xff]
    %v40 = vld [vmem:[%s0 + $0x8] sm:$0xff]
    %v41 = vld [vmem:[%s0 + $0x10] sm:$0xff]
    %v42 = vld [vmem:[%s0 + $0x18] sm:$0xff]
    %v43 = vld [vmem:[%s0 + $0x20] sm:$0xff]
    %v44 = vld [vmem:[%s0 + $0x28] sm:$0xff]
    %v45 = vld [vmem:[%s0 + $0x30] sm:$0xff]
    %v46 = vld [vmem:[%s0 + $0x38] sm:$0xff]
    %vm47 = vcmask 523264
    %v48 = vsel %vm47, %v39, 0.0
    %49 = vadd.xlane.f32.xlu0 %v48
    %v50 = vpop.xlane.xlu0 %49
    %v51 = vsel %vm47, %v40, 0.0
    %52 = vadd.xlane.f32.xlu0 %v51
    %v53 = vpop.xlane.xlu0 %52
    %v54 = vsel %vm47, %v41, 0.0
    %55 = vadd.xlane.f32.xlu0 %v54
    %v56 = vpop.xlane.xlu0 %55
    %v57 = vsel %vm47, %v42, 0.0
    %58 = vadd.xlane.f32.xlu0 %v57
    %v59 = vpop.xlane.xlu0 %58
    %v60 = vsel %vm47, %v43, 0.0
    %61 = vadd.xlane.f32.xlu0 %v60
    %v62 = vpop.xlane.xlu0 %61
    %v63 = vsel %vm47, %v44, 0.0
    %64 = vadd.xlane.f32.xlu0 %v63
    %v65 = vpop.xlane.xlu0 %64
    %v66 = vsel %vm47, %v45, 0.0
    %67 = vadd.xlane.f32.xlu0 %v66
    %v68 = vpop.xlane.xlu0 %67
    %v69 = vsel %vm47, %v46, 0.0
    %70 = vadd.xlane.f32.xlu0 %v69
    %v71 = vpop.xlane.xlu0 %70
    %v72 = vrcp.pop 64.0
    %v73 = vmul.f32 %v50, %v72
    %v74 = vmul.f32 %v53, %v72
    %v75 = vmul.f32 %v56, %v72
    %v76 = vmul.f32 %v59, %v72
    %v77 = vmul.f32 %v62, %v72
    %v78 = vmul.f32 %v65, %v72
    %v79 = vmul.f32 %v68, %v72
    %v80 = vmul.f32 %v71, %v72
    %v81 = vmul.f32 %v39, %v39
    %v82 = vmul.f32 %v40, %v40
    %v83 = vmul.f32 %v41, %v41
    %v84 = vmul.f32 %v42, %v42
    %v85 = vmul.f32 %v43, %v43
    %v86 = vmul.f32 %v44, %v44
    %v87 = vmul.f32 %v45, %v45
    %v88 = vmul.f32 %v46, %v46
    %v89 = vsel %vm47, %v81, 0.0
    %90 = vadd.xlane.f32.xlu0 %v89
    %v91 = vpop.xlane.xlu0 %90
    %v92 = vsel %vm47, %v82, 0.0
    %93 = vadd.xlane.f32.xlu0 %v92
    %v94 = vpop.xlane.xlu0 %93
    %v95 = vsel %vm47, %v83, 0.0
    %96 = vadd.xlane.f32.xlu0 %v95
    %v97 = vpop.xlane.xlu0 %96
    %v98 = vsel %vm47, %v84, 0.0
    %99 = vadd.xlane.f32.xlu0 %v98
    %v100 = vpop.xlane.xlu0 %99
    %v101 = vsel %vm47, %v85, 0.0
    %102 = vadd.xlane.f32.xlu0 %v101
    %v103 = vpop.xlane.xlu0 %102
    %v104 = vsel %vm47, %v86, 0.0
    %105 = vadd.xlane.f32.xlu0 %v104
    %v106 = vpop.xlane.xlu0 %105
    %v107 = vsel %vm47, %v87, 0.0
    %108 = vadd.xlane.f32.xlu0 %v107
    %v109 = vpop.xlane.xlu0 %108
    %v110 = vsel %vm47, %v88, 0.0
    %111 = vadd.xlane.f32.xlu0 %v110
    %v112 = vpop.xlane.xlu0 %111
    %v113 = vmul.f32 %v91, %v72
    %v114 = vmul.f32 %v94, %v72
    %v115 = vmul.f32 %v97, %v72
    %v116 = vmul.f32 %v100, %v72
    %v117 = vmul.f32 %v103, %v72
    %v118 = vmul.f32 %v106, %v72
    %v119 = vmul.f32 %v109, %v72
    %v120 = vmul.f32 %v112, %v72
    %v121 = vmul.f32 %v73, %v73
    %v122 = vmul.f32 %v74, %v74
    %v123 = vmul.f32 %v75, %v75
    %v124 = vmul.f32 %v76, %v76
    %v125 = vmul.f32 %v77, %v77
    %v126 = vmul.f32 %v78, %v78
    %v127 = vmul.f32 %v79, %v79
    %v128 = vmul.f32 %v80, %v80
    %v129 = vsub.f32 %v113, %v121
    %v130 = vsub.f32 %v114, %v122
    %v131 = vsub.f32 %v115, %v123
    %v132 = vsub.f32 %v116, %v124
    %v133 = vsub.f32 %v117, %v125
    %v134 = vsub.f32 %v118, %v126
    %v135 = vsub.f32 %v119, %v127
    %v136 = vsub.f32 %v120, %v128
    %v137 = vmax.f32 %v129, 0.0
    %v138 = vmax.f32 %v130, 0.0
    %v139 = vmax.f32 %v131, 0.0
    %v140 = vmax.f32 %v132, 0.0
    %v141 = vmax.f32 %v133, 0.0
    %v142 = vmax.f32 %v134, 0.0
    %v143 = vmax.f32 %v135, 0.0
    %v144 = vmax.f32 %v136, 0.0
    %v145 = vsub.f32 %v39, %v73
    %v146 = vsub.f32 %v40, %v74
    %v147 = vsub.f32 %v41, %v75
    %v148 = vsub.f32 %v42, %v76
    %v149 = vsub.f32 %v43, %v77
    %v150 = vsub.f32 %v44, %v78
    %v151 = vsub.f32 %v45, %v79
    %v152 = vsub.f32 %v46, %v80
    %v153 = vadd.f32 %v137, 1e-05
    %v154 = vadd.f32 %v138, 1e-05
    %v155 = vadd.f32 %v139, 1e-05
    %v156 = vadd.f32 %v140, 1e-05
    %v157 = vadd.f32 %v141, 1e-05
    %v158 = vadd.f32 %v142, 1e-05
    %v159 = vadd.f32 %v143, 1e-05
    %v160 = vadd.f32 %v144, 1e-05
    %v161 = vrsqrt.pop %v153
    %v162 = vrsqrt.pop %v154
    %v163 = vrsqrt.pop %v155
    %v164 = vrsqrt.pop %v156
    %v165 = vrsqrt.pop %v157
    %v166 = vrsqrt.pop %v158
    %v167 = vrsqrt.pop %v159
    %v168 = vrsqrt.pop %v160
    %v169 = vmul.f32 %v145, %v161
    %v170 = vmul.f32 %v146, %v162
    %v171 = vmul.f32 %v147, %v163
    %v172 = vmul.f32 %v148, %v164
    %v173 = vmul.f32 %v149, %v165
    %v174 = vmul.f32 %v150, %v166
    %v175 = vmul.f32 %v151, %v167
    %v176 = vmul.f32 %v152, %v168
    %v177 = vld [vmem:[%s1] sm:$0x1]
    %v179 = vlaneseq
    %v180 = vshrl.u32 %v179, 7
    %v181 = vsub.s32 0, %v180
    %v182 = vrot.slane %v177, %v181
    %v184 = vmul.f32 %v169, %v182
    %v185 = vmul.f32 %v170, %v182
    %v186 = vmul.f32 %v171, %v182
    %v187 = vmul.f32 %v172, %v182
    %v188 = vmul.f32 %v173, %v182
    %v189 = vmul.f32 %v174, %v182
    %v190 = vmul.f32 %v175, %v182
    %v191 = vmul.f32 %v176, %v182
    %v192 = vld [vmem:[%s2] sm:$0x1]
    %v194 = vlaneseq
    %v195 = vshrl.u32 %v194, 7
    %v196 = vsub.s32 0, %v195
    %v197 = vrot.slane %v192, %v196
    %v199 = vadd.f32 %v184, %v197
    %v200 = vadd.f32 %v185, %v197
    %v201 = vadd.f32 %v186, %v197
    %v202 = vadd.f32 %v187, %v197
    %v203 = vadd.f32 %v188, %v197
    %v204 = vadd.f32 %v189, %v197
    %v205 = vadd.f32 %v190, %v197
    %v206 = vadd.f32 %v191, %v197
    %v207 = vld [vmem:[%s3] sm:$0xff]
    %v208 = vld [vmem:[%s3 + $0x8] sm:$0xff]
    %v209 = vld [vmem:[%s3 + $0x10] sm:$0xff]
    %v210 = vld [vmem:[%s3 + $0x18] sm:$0xff]
    %v211 = vld [vmem:[%s3 + $0x20] sm:$0xff]
    %v212 = vld [vmem:[%s3 + $0x28] sm:$0xff]
    %v213 = vld [vmem:[%s3 + $0x30] sm:$0xff]
    %v214 = vld [vmem:[%s3 + $0x38] sm:$0xff]
    %v215 = vld [vmem:[%s4] sm:$0x1]
    %v217 = vlaneseq
    %v218 = vshrl.u32 %v217, 7
    %v219 = vsub.s32 0, %v218
    %v220 = vrot.slane %v215, %v219
    %v223 = vsel %vm47, %v199, 0
    %v226 = vsel %vm47, %v200, 0
    %v229 = vsel %vm47, %v201, 0
    %v232 = vsel %vm47, %v202, 0
    %v235 = vsel %vm47, %v203, 0
    %v238 = vsel %vm47, %v204, 0
    %v241 = vsel %vm47, %v205, 0
    %v244 = vsel %vm47, %v206, 0
    %246 = vmatprep.subr.mxu0 0.0
    %247 = vmatpush1.msra.mxu0 0.0
    %248 = vmatprep.subr.mxu0 0.0
    %249 = vmatpush1.msra.mxu0 0.0
    %250 = vmatprep.subr.mxu0 0.0
    %251 = vmatpush1.msra.mxu0 0.0
    %252 = vmatprep.subr.mxu0 0.0
    %253 = vmatpush1.msra.mxu0 0.0
    %254 = vmatprep.subr.mxu0 0.0
    %255 = vmatpush1.msra.mxu0 0.0
    %256 = vmatprep.subr.mxu0 0.0
    %257 = vmatpush1.msra.mxu0 0.0
    %258 = vmatprep.subr.mxu0 0.0
    %259 = vmatpush1.msra.mxu0 0.0
    %260 = vmatprep.subr.mxu0 0.0
    %261 = vmatpush1.msra.mxu0 0.0
    %262 = vmatprep.subr.mxu0 0.0
    %263 = vmatpush1.msra.mxu0 %v214
    %264 = vmatprep.subr.mxu0 0.0
    %265 = vmatpush1.msra.mxu0 %v213
    %266 = vmatprep.subr.mxu0 0.0
    %267 = vmatpush1.msra.mxu0 %v212
    %268 = vmatprep.subr.mxu0 0.0
    %269 = vmatpush1.msra.mxu0 %v211
    %270 = vmatprep.subr.mxu0 0.0
    %271 = vmatpush1.msra.mxu0 %v210
    %272 = vmatprep.subr.mxu0 0.0
    %273 = vmatpush1.msra.mxu0 %v209
    %274 = vmatprep.subr.mxu0 0.0
    %275 = vmatpush1.msra.mxu0 %v208
    %276 = vmatprep.subr.mxu0 0.0
    %277 = vmatpush1.msra.mxu0 %v207
    %278 = vmatprep.subr.mxu0 0.0
    %279 = vmatpush2.msra.mxu0 0.0
    %280 = vmatprep.subr.mxu0 0.0
    %281 = vmatpush2.msra.mxu0 0.0
    %282 = vmatprep.subr.mxu0 0.0
    %283 = vmatpush2.msra.mxu0 0.0
    %284 = vmatprep.subr.mxu0 0.0
    %285 = vmatpush2.msra.mxu0 0.0
    %286 = vmatprep.subr.mxu0 0.0
    %287 = vmatpush2.msra.mxu0 0.0
    %288 = vmatprep.subr.mxu0 0.0
    %289 = vmatpush2.msra.mxu0 0.0
    %290 = vmatprep.subr.mxu0 0.0
    %291 = vmatpush2.msra.mxu0 0.0
    %292 = vmatprep.subr.mxu0 0.0
    %293 = vmatpush2.msra.mxu0 0.0
    %294 = vmatprep.subr.mxu0 0.0
    %295 = vmatpush2.msra.mxu0 0.0
    %296 = vmatprep.subr.mxu0 0.0
    %297 = vmatpush2.msra.mxu0 0.0
    %298 = vmatprep.subr.mxu0 0.0
    %299 = vmatpush2.msra.mxu0 0.0
    %300 = vmatprep.subr.mxu0 0.0
    %301 = vmatpush2.msra.mxu0 0.0
    %302 = vmatprep.subr.mxu0 0.0
    %303 = vmatpush2.msra.mxu0 0.0
    %304 = vmatprep.subr.mxu0 0.0
    %305 = vmatpush2.msra.mxu0 0.0
    %306 = vmatprep.subr.mxu0 0.0
    %307 = vmatpush2.msra.mxu0 0.0
    %308 = vmatprep.subr.mxu0 0.0
    %309 = vmatpush2.msra.mxu0 0.0
    %310 = vmatprep.mubr.f32.mxu0 0.0
    %311 = vmatmul.mubr.f32.gmra.mxu0 %v223
    %v312 = vpop.f32.mrf.mxu0
    %v313 = vadd.f32 %v220, %v312
    %v314 = vpop.f32.mrf.mxu0
    %315 = vmatprep.mubr.f32.mxu0 0.0
    %316 = vmatmul.mubr.f32.gmra.mxu0 %v226
    %v317 = vpop.f32.mrf.mxu0
    %v318 = vadd.f32 %v220, %v317
    %v319 = vpop.f32.mrf.mxu0
    %320 = vmatprep.mubr.f32.mxu0 0.0
    %321 = vmatmul.mubr.f32.gmra.mxu0 %v229
    %v322 = vpop.f32.mrf.mxu0
    %v323 = vadd.f32 %v220, %v322
    %v324 = vpop.f32.mrf.mxu0
    %325 = vmatprep.mubr.f32.mxu0 0.0
    %326 = vmatmul.mubr.f32.gmra.mxu0 %v232
    %v327 = vpop.f32.mrf.mxu0
    %v328 = vadd.f32 %v220, %v327
    %v329 = vpop.f32.mrf.mxu0
    %330 = vmatprep.mubr.f32.mxu0 0.0
    %331 = vmatmul.mubr.f32.gmra.mxu0 %v235
    %v332 = vpop.f32.mrf.mxu0
    %v333 = vadd.f32 %v220, %v332
    %v334 = vpop.f32.mrf.mxu0
    %335 = vmatprep.mubr.f32.mxu0 0.0
    %336 = vmatmul.mubr.f32.gmra.mxu0 %v238
    %v337 = vpop.f32.mrf.mxu0
    %v338 = vadd.f32 %v220, %v337
    %v339 = vpop.f32.mrf.mxu0
    %340 = vmatprep.mubr.f32.mxu0 0.0
    %341 = vmatmul.mubr.f32.gmra.mxu0 %v241
    %v342 = vpop.f32.mrf.mxu0
    %v343 = vadd.f32 %v220, %v342
    %v344 = vpop.f32.mrf.mxu0
    %345 = vmatprep.mubr.f32.mxu0 0.0
    %346 = vmatmul.mubr.f32.gmra.mxu0 %v244
    %v347 = vpop.f32.mrf.mxu0
    %v348 = vadd.f32 %v220, %v347
    %v349 = vpop.f32.mrf.mxu0
    %350 = vdwg.mxu0
    %v351 = vmul.f32 %v313, 0.5
    %v352 = vmul.f32 %v318, 0.5
    %v353 = vmul.f32 %v323, 0.5
    %v354 = vmul.f32 %v328, 0.5
    %v355 = vmul.f32 %v333, 0.5
    %v356 = vmul.f32 %v338, 0.5
    %v357 = vmul.f32 %v343, 0.5
    %v358 = vmul.f32 %v348, 0.5
    %v359 = vmul.f32 %v313, 0.70710677
    %v360 = vmul.f32 %v318, 0.70710677
    %v361 = vmul.f32 %v323, 0.70710677
    %v362 = vmul.f32 %v328, 0.70710677
    %v363 = vmul.f32 %v333, 0.70710677
    %v364 = vmul.f32 %v338, 0.70710677
    %v365 = vmul.f32 %v343, 0.70710677
    %v366 = vmul.f32 %v348, 0.70710677
    %v367 = vand.u32 2147483647, %v359
    %v368 = vand.u32 2147483647, %v360
    %v369 = vand.u32 2147483647, %v361
    %v370 = vand.u32 2147483647, %v362
    %v371 = vand.u32 2147483647, %v363
    %v372 = vand.u32 2147483647, %v364
    %v373 = vand.u32 2147483647, %v365
    %v374 = vand.u32 2147483647, %v366
    %v375 = vmul.f32 %v367, 0.3275911
    %v376 = vmul.f32 %v368, 0.3275911
    %v377 = vmul.f32 %v369, 0.3275911
    %v378 = vmul.f32 %v370, 0.3275911
    %v379 = vmul.f32 %v371, 0.3275911
    %v380 = vmul.f32 %v372, 0.3275911
    %v381 = vmul.f32 %v373, 0.3275911
    %v382 = vmul.f32 %v374, 0.3275911
    %v383 = vadd.f32 %v375, 1.0
    %v384 = vadd.f32 %v376, 1.0
    %v385 = vadd.f32 %v377, 1.0
    %v386 = vadd.f32 %v378, 1.0
    %v387 = vadd.f32 %v379, 1.0
    %v388 = vadd.f32 %v380, 1.0
    %v389 = vadd.f32 %v381, 1.0
    %v390 = vadd.f32 %v382, 1.0
    %v391 = vrcp.pop %v383
    %v392 = vmul.f32 1.0, %v391
    %v393 = vrcp.pop %v384
    %v394 = vmul.f32 1.0, %v393
    %v395 = vrcp.pop %v385
    %v396 = vmul.f32 1.0, %v395
    %v397 = vrcp.pop %v386
    %v398 = vmul.f32 1.0, %v397
    %v399 = vrcp.pop %v387
    %v400 = vmul.f32 1.0, %v399
    %v401 = vrcp.pop %v388
    %v402 = vmul.f32 1.0, %v401
    %v403 = vrcp.pop %v389
    %v404 = vmul.f32 1.0, %v403
    %v405 = vrcp.pop %v390
    %v406 = vmul.f32 1.0, %v405
    %v407 = vmul.f32 %v392, 1.0614054
    %v408 = vmul.f32 %v394, 1.0614054
    %v409 = vmul.f32 %v396, 1.0614054
    %v410 = vmul.f32 %v398, 1.0614054
    %v411 = vmul.f32 %v400, 1.0614054
    %v412 = vmul.f32 %v402, 1.0614054
    %v413 = vmul.f32 %v404, 1.0614054
    %v414 = vmul.f32 %v406, 1.0614054
    %v415 = vadd.f32 %v407, -1.4531521
    %v416 = vadd.f32 %v408, -1.4531521
    %v417 = vadd.f32 %v409, -1.4531521
    %v418 = vadd.f32 %v410, -1.4531521
    %v419 = vadd.f32 %v411, -1.4531521
    %v420 = vadd.f32 %v412, -1.4531521
    %v421 = vadd.f32 %v413, -1.4531521
    %v422 = vadd.f32 %v414, -1.4531521
    %v423 = vmul.f32 %v415, %v392
    %v424 = vmul.f32 %v416, %v394
    %v425 = vmul.f32 %v417, %v396
    %v426 = vmul.f32 %v418, %v398
    %v427 = vmul.f32 %v419, %v400
    %v428 = vmul.f32 %v420, %v402
    %v429 = vmul.f32 %v421, %v404
    %v430 = vmul.f32 %v422, %v406
    %v431 = vadd.f32 %v423, 1.4214138
    %v432 = vadd.f32 %v424, 1.4214138
    %v433 = vadd.f32 %v425, 1.4214138
    %v434 = vadd.f32 %v426, 1.4214138
    %v435 = vadd.f32 %v427, 1.4214138
    %v436 = vadd.f32 %v428, 1.4214138
    %v437 = vadd.f32 %v429, 1.4214138
    %v438 = vadd.f32 %v430, 1.4214138
    %v439 = vmul.f32 %v431, %v392
    %v440 = vmul.f32 %v432, %v394
    %v441 = vmul.f32 %v433, %v396
    %v442 = vmul.f32 %v434, %v398
    %v443 = vmul.f32 %v435, %v400
    %v444 = vmul.f32 %v436, %v402
    %v445 = vmul.f32 %v437, %v404
    %v446 = vmul.f32 %v438, %v406
    %v447 = vadd.f32 %v439, -0.28449672
    %v448 = vadd.f32 %v440, -0.28449672
    %v449 = vadd.f32 %v441, -0.28449672
    %v450 = vadd.f32 %v442, -0.28449672
    %v451 = vadd.f32 %v443, -0.28449672
    %v452 = vadd.f32 %v444, -0.28449672
    %v453 = vadd.f32 %v445, -0.28449672
    %v454 = vadd.f32 %v446, -0.28449672
    %v455 = vmul.f32 %v447, %v392
    %v456 = vmul.f32 %v448, %v394
    %v457 = vmul.f32 %v449, %v396
    %v458 = vmul.f32 %v450, %v398
    %v459 = vmul.f32 %v451, %v400
    %v460 = vmul.f32 %v452, %v402
    %v461 = vmul.f32 %v453, %v404
    %v462 = vmul.f32 %v454, %v406
    %v463 = vadd.f32 %v455, 0.2548296
    %v464 = vadd.f32 %v456, 0.2548296
    %v465 = vadd.f32 %v457, 0.2548296
    %v466 = vadd.f32 %v458, 0.2548296
    %v467 = vadd.f32 %v459, 0.2548296
    %v468 = vadd.f32 %v460, 0.2548296
    %v469 = vadd.f32 %v461, 0.2548296
    %v470 = vadd.f32 %v462, 0.2548296
    %v471 = vmul.f32 %v463, %v392
    %v472 = vmul.f32 %v464, %v394
    %v473 = vmul.f32 %v465, %v396
    %v474 = vmul.f32 %v466, %v398
    %v475 = vmul.f32 %v467, %v400
    %v476 = vmul.f32 %v468, %v402
    %v477 = vmul.f32 %v469, %v404
    %v478 = vmul.f32 %v470, %v406
    %v479 = vsub.f32 0.0, %v367
    %v480 = vsub.f32 0.0, %v368
    %v481 = vsub.f32 0.0, %v369
    %v482 = vsub.f32 0.0, %v370
    %v483 = vsub.f32 0.0, %v371
    %v484 = vsub.f32 0.0, %v372
    %v485 = vsub.f32 0.0, %v373
    %v486 = vsub.f32 0.0, %v374
    %v487 = vmul.f32 %v479, %v367
    %v488 = vmul.f32 %v480, %v368
    %v489 = vmul.f32 %v481, %v369
    %v490 = vmul.f32 %v482, %v370
    %v491 = vmul.f32 %v483, %v371
    %v492 = vmul.f32 %v484, %v372
    %v493 = vmul.f32 %v485, %v373
    %v494 = vmul.f32 %v486, %v374
    %v495 = vmul.f32 %v487, 1.442695
    %v496 = vpow.pop %v495
    %v497 = vmul.f32 %v488, 1.442695
    %v498 = vpow.pop %v497
    %v499 = vmul.f32 %v489, 1.442695
    %v500 = vpow.pop %v499
    %v501 = vmul.f32 %v490, 1.442695
    %v502 = vpow.pop %v501
    %v503 = vmul.f32 %v491, 1.442695
    %v504 = vpow.pop %v503
    %v505 = vmul.f32 %v492, 1.442695
    %v506 = vpow.pop %v505
    %v507 = vmul.f32 %v493, 1.442695
    %v508 = vpow.pop %v507
    %v509 = vmul.f32 %v494, 1.442695
    %v510 = vpow.pop %v509
    %v511 = vmul.f32 %v471, %v496
    %v512 = vmul.f32 %v472, %v498
    %v513 = vmul.f32 %v473, %v500
    %v514 = vmul.f32 %v474, %v502
    %v515 = vmul.f32 %v475, %v504
    %v516 = vmul.f32 %v476, %v506
    %v517 = vmul.f32 %v477, %v508
    %v518 = vmul.f32 %v478, %v510
    %v519 = vsub.f32 1.0, %v511
    %v520 = vsub.f32 1.0, %v512
    %v521 = vsub.f32 1.0, %v513
    %v522 = vsub.f32 1.0, %v514
    %v523 = vsub.f32 1.0, %v515
    %v524 = vsub.f32 1.0, %v516
    %v525 = vsub.f32 1.0, %v517
    %v526 = vsub.f32 1.0, %v518
    %vm527 = vcmp.lt.f32.partialorder %v359, 0.0
    %vm528 = vcmp.lt.f32.partialorder %v360, 0.0
    %vm529 = vcmp.lt.f32.partialorder %v361, 0.0
    %vm530 = vcmp.lt.f32.partialorder %v362, 0.0
    %vm531 = vcmp.lt.f32.partialorder %v363, 0.0
    %vm532 = vcmp.lt.f32.partialorder %v364, 0.0
    %vm533 = vcmp.lt.f32.partialorder %v365, 0.0
    %vm534 = vcmp.lt.f32.partialorder %v366, 0.0
    %v535 = vsub.f32 0.0, %v519
    %v536 = vsub.f32 0.0, %v520
    %v537 = vsub.f32 0.0, %v521
    %v538 = vsub.f32 0.0, %v522
    %v539 = vsub.f32 0.0, %v523
    %v540 = vsub.f32 0.0, %v524
    %v541 = vsub.f32 0.0, %v525
    %v542 = vsub.f32 0.0, %v526
    %v543 = vsel %vm527, %v535, %v519
    %v544 = vsel %vm528, %v536, %v520
    %v545 = vsel %vm529, %v537, %v521
    %v546 = vsel %vm530, %v538, %v522
    %v547 = vsel %vm531, %v539, %v523
    %v548 = vsel %vm532, %v540, %v524
    %v549 = vsel %vm533, %v541, %v525
    %v550 = vsel %vm534, %v542, %v526
    %v551 = vadd.f32 %v543, 1.0
    %v552 = vadd.f32 %v544, 1.0
    %v553 = vadd.f32 %v545, 1.0
    %v554 = vadd.f32 %v546, 1.0
    %v555 = vadd.f32 %v547, 1.0
    %v556 = vadd.f32 %v548, 1.0
    %v557 = vadd.f32 %v549, 1.0
    %v558 = vadd.f32 %v550, 1.0
    %v559 = vmul.f32 %v351, %v551
    %v560 = vmul.f32 %v352, %v552
    %v561 = vmul.f32 %v353, %v553
    %v562 = vmul.f32 %v354, %v554
    %v563 = vmul.f32 %v355, %v555
    %v564 = vmul.f32 %v356, %v556
    %v565 = vmul.f32 %v357, %v557
    %v566 = vmul.f32 %v358, %v558
    %v567 = vld [vmem:[%s5] sm:$0xff]
    %v568 = vld [vmem:[%s5 + $0x8] sm:$0xff]
    %v569 = vld [vmem:[%s5 + $0x10] sm:$0xff]
    %v570 = vld [vmem:[%s5 + $0x18] sm:$0xff]
    %v571 = vld [vmem:[%s5 + $0x20] sm:$0xff]
    %v572 = vld [vmem:[%s5 + $0x28] sm:$0xff]
    %v573 = vld [vmem:[%s5 + $0x30] sm:$0xff]
    %v574 = vld [vmem:[%s5 + $0x38] sm:$0xff]
    %v575 = vld [vmem:[%s6] sm:$0x1]
    %v577 = vlaneseq
    %v578 = vshrl.u32 %v577, 7
    %v579 = vsub.s32 0, %v578
    %v580 = vrot.slane %v575, %v579
    %v583 = vsel %vm47, %v559, 0
    %v586 = vsel %vm47, %v560, 0
    %v589 = vsel %vm47, %v561, 0
    %v592 = vsel %vm47, %v562, 0
    %v595 = vsel %vm47, %v563, 0
    %v598 = vsel %vm47, %v564, 0
    %v601 = vsel %vm47, %v565, 0
    %v604 = vsel %vm47, %v566, 0
    %606 = vmatprep.subr.mxu0 0.0
    %607 = vmatpush1.msra.mxu0 0.0
    %608 = vmatprep.subr.mxu0 0.0
    %609 = vmatpush1.msra.mxu0 0.0
    %610 = vmatprep.subr.mxu0 0.0
    %611 = vmatpush1.msra.mxu0 0.0
    %612 = vmatprep.subr.mxu0 0.0
    %613 = vmatpush1.msra.mxu0 0.0
    %614 = vmatprep.subr.mxu0 0.0
    %615 = vmatpush1.msra.mxu0 0.0
    %616 = vmatprep.subr.mxu0 0.0
    %617 = vmatpush1.msra.mxu0 0.0
    %618 = vmatprep.subr.mxu0 0.0
    %619 = vmatpush1.msra.mxu0 0.0
    %620 = vmatprep.subr.mxu0 0.0
    %621 = vmatpush1.msra.mxu0 0.0
    %622 = vmatprep.subr.mxu0 0.0
    %623 = vmatpush1.msra.mxu0 %v574
    %624 = vmatprep.subr.mxu0 0.0
    %625 = vmatpush1.msra.mxu0 %v573
    %626 = vmatprep.subr.mxu0 0.0
    %627 = vmatpush1.msra.mxu0 %v572
    %628 = vmatprep.subr.mxu0 0.0
    %629 = vmatpush1.msra.mxu0 %v571
    %630 = vmatprep.subr.mxu0 0.0
    %631 = vmatpush1.msra.mxu0 %v570
    %632 = vmatprep.subr.mxu0 0.0
    %633 = vmatpush1.msra.mxu0 %v569
    %634 = vmatprep.subr.mxu0 0.0
    %635 = vmatpush1.msra.mxu0 %v568
    %636 = vmatprep.subr.mxu0 0.0
    %637 = vmatpush1.msra.mxu0 %v567
    %638 = vmatprep.subr.mxu0 0.0
    %639 = vmatpush2.msra.mxu0 0.0
    %640 = vmatprep.subr.mxu0 0.0
    %641 = vmatpush2.msra.mxu0 0.0
    %642 = vmatprep.subr.mxu0 0.0
    %643 = vmatpush2.msra.mxu0 0.0
    %644 = vmatprep.subr.mxu0 0.0
    %645 = vmatpush2.msra.mxu0 0.0
    %646 = vmatprep.subr.mxu0 0.0
    %647 = vmatpush2.msra.mxu0 0.0
    %648 = vmatprep.subr.mxu0 0.0
    %649 = vmatpush2.msra.mxu0 0.0
    %650 = vmatprep.subr.mxu0 0.0
    %651 = vmatpush2.msra.mxu0 0.0
    %652 = vmatprep.subr.mxu0 0.0
    %653 = vmatpush2.msra.mxu0 0.0
    %654 = vmatprep.subr.mxu0 0.0
    %655 = vmatpush2.msra.mxu0 0.0
    %656 = vmatprep.subr.mxu0 0.0
    %657 = vmatpush2.msra.mxu0 0.0
    %658 = vmatprep.subr.mxu0 0.0
    %659 = vmatpush2.msra.mxu0 0.0
    %660 = vmatprep.subr.mxu0 0.0
    %661 = vmatpush2.msra.mxu0 0.0
    %662 = vmatprep.subr.mxu0 0.0
    %663 = vmatpush2.msra.mxu0 0.0
    %664 = vmatprep.subr.mxu0 0.0
    %665 = vmatpush2.msra.mxu0 0.0
    %666 = vmatprep.subr.mxu0 0.0
    %667 = vmatpush2.msra.mxu0 0.0
    %668 = vmatprep.subr.mxu0 0.0
    %669 = vmatpush2.msra.mxu0 0.0
    %670 = vmatprep.mubr.f32.mxu0 0.0
    %671 = vmatmul.mubr.f32.gmra.mxu0 %v583
    %v672 = vpop.f32.mrf.mxu0
    %v673 = vadd.f32 %v580, %v672
    %v674 = vpop.f32.mrf.mxu0
    %675 = vmatprep.mubr.f32.mxu0 0.0
    %676 = vmatmul.mubr.f32.gmra.mxu0 %v586
    %v677 = vpop.f32.mrf.mxu0
    %v678 = vadd.f32 %v580, %v677
    %v679 = vpop.f32.mrf.mxu0
    %680 = vmatprep.mubr.f32.mxu0 0.0
    %681 = vmatmul.mubr.f32.gmra.mxu0 %v589
    %v682 = vpop.f32.mrf.mxu0
    %v683 = vadd.f32 %v580, %v682
    %v684 = vpop.f32.mrf.mxu0
    %685 = vmatprep.mubr.f32.mxu0 0.0
    %686 = vmatmul.mubr.f32.gmra.mxu0 %v592
    %v687 = vpop.f32.mrf.mxu0
    %v688 = vadd.f32 %v580, %v687
    %v689 = vpop.f32.mrf.mxu0
    %690 = vmatprep.mubr.f32.mxu0 0.0
    %691 = vmatmul.mubr.f32.gmra.mxu0 %v595
    %v692 = vpop.f32.mrf.mxu0
    %v693 = vadd.f32 %v580, %v692
    %v694 = vpop.f32.mrf.mxu0
    %695 = vmatprep.mubr.f32.mxu0 0.0
    %696 = vmatmul.mubr.f32.gmra.mxu0 %v598
    %v697 = vpop.f32.mrf.mxu0
    %v698 = vadd.f32 %v580, %v697
    %v699 = vpop.f32.mrf.mxu0
    %700 = vmatprep.mubr.f32.mxu0 0.0
    %701 = vmatmul.mubr.f32.gmra.mxu0 %v601
    %v702 = vpop.f32.mrf.mxu0
    %v703 = vadd.f32 %v580, %v702
    %v704 = vpop.f32.mrf.mxu0
    %705 = vmatprep.mubr.f32.mxu0 0.0
    %706 = vmatmul.mubr.f32.gmra.mxu0 %v604
    %v707 = vpop.f32.mrf.mxu0
    %v708 = vadd.f32 %v580, %v707
    %v709 = vpop.f32.mrf.mxu0
    %710 = vdwg.mxu0
    %v711 = vmul.f32 %v673, 0.5
    %v712 = vmul.f32 %v678, 0.5
    %v713 = vmul.f32 %v683, 0.5
    %v714 = vmul.f32 %v688, 0.5
    %v715 = vmul.f32 %v693, 0.5
    %v716 = vmul.f32 %v698, 0.5
    %v717 = vmul.f32 %v703, 0.5
    %v718 = vmul.f32 %v708, 0.5
    %v719 = vmul.f32 %v673, 0.70710677
    %v720 = vmul.f32 %v678, 0.70710677
    %v721 = vmul.f32 %v683, 0.70710677
    %v722 = vmul.f32 %v688, 0.70710677
    %v723 = vmul.f32 %v693, 0.70710677
    %v724 = vmul.f32 %v698, 0.70710677
    %v725 = vmul.f32 %v703, 0.70710677
    %v726 = vmul.f32 %v708, 0.70710677
    %v727 = vand.u32 2147483647, %v719
    %v728 = vand.u32 2147483647, %v720
    %v729 = vand.u32 2147483647, %v721
    %v730 = vand.u32 2147483647, %v722
    %v731 = vand.u32 2147483647, %v723
    %v732 = vand.u32 2147483647, %v724
    %v733 = vand.u32 2147483647, %v725
    %v734 = vand.u32 2147483647, %v726
    %v735 = vmul.f32 %v727, 0.3275911
    %v736 = vmul.f32 %v728, 0.3275911
    %v737 = vmul.f32 %v729, 0.3275911
    %v738 = vmul.f32 %v730, 0.3275911
    %v739 = vmul.f32 %v731, 0.3275911
    %v740 = vmul.f32 %v732, 0.3275911
    %v741 = vmul.f32 %v733, 0.3275911
    %v742 = vmul.f32 %v734, 0.3275911
    %v743 = vadd.f32 %v735, 1.0
    %v744 = vadd.f32 %v736, 1.0
    %v745 = vadd.f32 %v737, 1.0
    %v746 = vadd.f32 %v738, 1.0
    %v747 = vadd.f32 %v739, 1.0
    %v748 = vadd.f32 %v740, 1.0
    %v749 = vadd.f32 %v741, 1.0
    %v750 = vadd.f32 %v742, 1.0
    %v751 = vrcp.pop %v743
    %v752 = vmul.f32 1.0, %v751
    %v753 = vrcp.pop %v744
    %v754 = vmul.f32 1.0, %v753
    %v755 = vrcp.pop %v745
    %v756 = vmul.f32 1.0, %v755
    %v757 = vrcp.pop %v746
    %v758 = vmul.f32 1.0, %v757
    %v759 = vrcp.pop %v747
    %v760 = vmul.f32 1.0, %v759
    %v761 = vrcp.pop %v748
    %v762 = vmul.f32 1.0, %v761
    %v763 = vrcp.pop %v749
    %v764 = vmul.f32 1.0, %v763
    %v765 = vrcp.pop %v750
    %v766 = vmul.f32 1.0, %v765
    %v767 = vmul.f32 %v752, 1.0614054
    %v768 = vmul.f32 %v754, 1.0614054
    %v769 = vmul.f32 %v756, 1.0614054
    %v770 = vmul.f32 %v758, 1.0614054
    %v771 = vmul.f32 %v760, 1.0614054
    %v772 = vmul.f32 %v762, 1.0614054
    %v773 = vmul.f32 %v764, 1.0614054
    %v774 = vmul.f32 %v766, 1.0614054
    %v775 = vadd.f32 %v767, -1.4531521
    %v776 = vadd.f32 %v768, -1.4531521
    %v777 = vadd.f32 %v769, -1.4531521
    %v778 = vadd.f32 %v770, -1.4531521
    %v779 = vadd.f32 %v771, -1.4531521
    %v780 = vadd.f32 %v772, -1.4531521
    %v781 = vadd.f32 %v773, -1.4531521
    %v782 = vadd.f32 %v774, -1.4531521
    %v783 = vmul.f32 %v775, %v752
    %v784 = vmul.f32 %v776, %v754
    %v785 = vmul.f32 %v777, %v756
    %v786 = vmul.f32 %v778, %v758
    %v787 = vmul.f32 %v779, %v760
    %v788 = vmul.f32 %v780, %v762
    %v789 = vmul.f32 %v781, %v764
    %v790 = vmul.f32 %v782, %v766
    %v791 = vadd.f32 %v783, 1.4214138
    %v792 = vadd.f32 %v784, 1.4214138
    %v793 = vadd.f32 %v785, 1.4214138
    %v794 = vadd.f32 %v786, 1.4214138
    %v795 = vadd.f32 %v787, 1.4214138
    %v796 = vadd.f32 %v788, 1.4214138
    %v797 = vadd.f32 %v789, 1.4214138
    %v798 = vadd.f32 %v790, 1.4214138
    %v799 = vmul.f32 %v791, %v752
    %v800 = vmul.f32 %v792, %v754
    %v801 = vmul.f32 %v793, %v756
    %v802 = vmul.f32 %v794, %v758
    %v803 = vmul.f32 %v795, %v760
    %v804 = vmul.f32 %v796, %v762
    %v805 = vmul.f32 %v797, %v764
    %v806 = vmul.f32 %v798, %v766
    %v807 = vadd.f32 %v799, -0.28449672
    %v808 = vadd.f32 %v800, -0.28449672
    %v809 = vadd.f32 %v801, -0.28449672
    %v810 = vadd.f32 %v802, -0.28449672
    %v811 = vadd.f32 %v803, -0.28449672
    %v812 = vadd.f32 %v804, -0.28449672
    %v813 = vadd.f32 %v805, -0.28449672
    %v814 = vadd.f32 %v806, -0.28449672
    %v815 = vmul.f32 %v807, %v752
    %v816 = vmul.f32 %v808, %v754
    %v817 = vmul.f32 %v809, %v756
    %v818 = vmul.f32 %v810, %v758
    %v819 = vmul.f32 %v811, %v760
    %v820 = vmul.f32 %v812, %v762
    %v821 = vmul.f32 %v813, %v764
    %v822 = vmul.f32 %v814, %v766
    %v823 = vadd.f32 %v815, 0.2548296
    %v824 = vadd.f32 %v816, 0.2548296
    %v825 = vadd.f32 %v817, 0.2548296
    %v826 = vadd.f32 %v818, 0.2548296
    %v827 = vadd.f32 %v819, 0.2548296
    %v828 = vadd.f32 %v820, 0.2548296
    %v829 = vadd.f32 %v821, 0.2548296
    %v830 = vadd.f32 %v822, 0.2548296
    %v831 = vmul.f32 %v823, %v752
    %v832 = vmul.f32 %v824, %v754
    %v833 = vmul.f32 %v825, %v756
    %v834 = vmul.f32 %v826, %v758
    %v835 = vmul.f32 %v827, %v760
    %v836 = vmul.f32 %v828, %v762
    %v837 = vmul.f32 %v829, %v764
    %v838 = vmul.f32 %v830, %v766
    %v839 = vsub.f32 0.0, %v727
    %v840 = vsub.f32 0.0, %v728
    %v841 = vsub.f32 0.0, %v729
    %v842 = vsub.f32 0.0, %v730
    %v843 = vsub.f32 0.0, %v731
    %v844 = vsub.f32 0.0, %v732
    %v845 = vsub.f32 0.0, %v733
    %v846 = vsub.f32 0.0, %v734
    %v847 = vmul.f32 %v839, %v727
    %v848 = vmul.f32 %v840, %v728
    %v849 = vmul.f32 %v841, %v729
    %v850 = vmul.f32 %v842, %v730
    %v851 = vmul.f32 %v843, %v731
    %v852 = vmul.f32 %v844, %v732
    %v853 = vmul.f32 %v845, %v733
    %v854 = vmul.f32 %v846, %v734
    %v855 = vmul.f32 %v847, 1.442695
    %v856 = vpow.pop %v855
    %v857 = vmul.f32 %v848, 1.442695
    %v858 = vpow.pop %v857
    %v859 = vmul.f32 %v849, 1.442695
    %v860 = vpow.pop %v859
    %v861 = vmul.f32 %v850, 1.442695
    %v862 = vpow.pop %v861
    %v863 = vmul.f32 %v851, 1.442695
    %v864 = vpow.pop %v863
    %v865 = vmul.f32 %v852, 1.442695
    %v866 = vpow.pop %v865
    %v867 = vmul.f32 %v853, 1.442695
    %v868 = vpow.pop %v867
    %v869 = vmul.f32 %v854, 1.442695
    %v870 = vpow.pop %v869
    %v871 = vmul.f32 %v831, %v856
    %v872 = vmul.f32 %v832, %v858
    %v873 = vmul.f32 %v833, %v860
    %v874 = vmul.f32 %v834, %v862
    %v875 = vmul.f32 %v835, %v864
    %v876 = vmul.f32 %v836, %v866
    %v877 = vmul.f32 %v837, %v868
    %v878 = vmul.f32 %v838, %v870
    %v879 = vsub.f32 1.0, %v871
    %v880 = vsub.f32 1.0, %v872
    %v881 = vsub.f32 1.0, %v873
    %v882 = vsub.f32 1.0, %v874
    %v883 = vsub.f32 1.0, %v875
    %v884 = vsub.f32 1.0, %v876
    %v885 = vsub.f32 1.0, %v877
    %v886 = vsub.f32 1.0, %v878
    %vm887 = vcmp.lt.f32.partialorder %v719, 0.0
    %vm888 = vcmp.lt.f32.partialorder %v720, 0.0
    %vm889 = vcmp.lt.f32.partialorder %v721, 0.0
    %vm890 = vcmp.lt.f32.partialorder %v722, 0.0
    %vm891 = vcmp.lt.f32.partialorder %v723, 0.0
    %vm892 = vcmp.lt.f32.partialorder %v724, 0.0
    %vm893 = vcmp.lt.f32.partialorder %v725, 0.0
    %vm894 = vcmp.lt.f32.partialorder %v726, 0.0
    %v895 = vsub.f32 0.0, %v879
    %v896 = vsub.f32 0.0, %v880
    %v897 = vsub.f32 0.0, %v881
    %v898 = vsub.f32 0.0, %v882
    %v899 = vsub.f32 0.0, %v883
    %v900 = vsub.f32 0.0, %v884
    %v901 = vsub.f32 0.0, %v885
    %v902 = vsub.f32 0.0, %v886
    %v903 = vsel %vm887, %v895, %v879
    %v904 = vsel %vm888, %v896, %v880
    %v905 = vsel %vm889, %v897, %v881
    %v906 = vsel %vm890, %v898, %v882
    %v907 = vsel %vm891, %v899, %v883
    %v908 = vsel %vm892, %v900, %v884
    %v909 = vsel %vm893, %v901, %v885
    %v910 = vsel %vm894, %v902, %v886
    %v911 = vadd.f32 %v903, 1.0
    %v912 = vadd.f32 %v904, 1.0
    %v913 = vadd.f32 %v905, 1.0
    %v914 = vadd.f32 %v906, 1.0
    %v915 = vadd.f32 %v907, 1.0
    %v916 = vadd.f32 %v908, 1.0
    %v917 = vadd.f32 %v909, 1.0
    %v918 = vadd.f32 %v910, 1.0
    %v919 = vmul.f32 %v711, %v911
    %v920 = vmul.f32 %v712, %v912
    %v921 = vmul.f32 %v713, %v913
    %v922 = vmul.f32 %v714, %v914
    %v923 = vmul.f32 %v715, %v915
    %v924 = vmul.f32 %v716, %v916
    %v925 = vmul.f32 %v717, %v917
    %v926 = vmul.f32 %v718, %v918
    %v927 = vld [vmem:[%s7] sm:$0xff]
    %v928 = vld [vmem:[%s7 + $0x8] sm:$0xff]
    %v929 = vld [vmem:[%s7 + $0x10] sm:$0xff]
    %v930 = vld [vmem:[%s7 + $0x18] sm:$0xff]
    %v931 = vld [vmem:[%s8] sm:$0x1]
    %v933 = vlaneseq
    %v934 = vshrl.u32 %v933, 7
    %v935 = vsub.s32 0, %v934
    %v936 = vrot.slane %v931, %v935
    %vm938 = vcmask 261120
    %v940 = vsel %vm938, %v919, 0
    %v943 = vsel %vm938, %v920, 0
    %v946 = vsel %vm938, %v921, 0
    %v949 = vsel %vm938, %v922, 0
    %v952 = vsel %vm938, %v923, 0
    %v955 = vsel %vm938, %v924, 0
    %v958 = vsel %vm938, %v925, 0
    %v961 = vsel %vm938, %v926, 0
    %963 = vmatprep.subr.mxu0 0.0
    %964 = vmatpush1.msra.mxu0 0.0
    %965 = vmatprep.subr.mxu0 0.0
    %966 = vmatpush1.msra.mxu0 0.0
    %967 = vmatprep.subr.mxu0 0.0
    %968 = vmatpush1.msra.mxu0 0.0
    %969 = vmatprep.subr.mxu0 0.0
    %970 = vmatpush1.msra.mxu0 0.0
    %971 = vmatprep.subr.mxu0 0.0
    %972 = vmatpush1.msra.mxu0 0.0
    %973 = vmatprep.subr.mxu0 0.0
    %974 = vmatpush1.msra.mxu0 0.0
    %975 = vmatprep.subr.mxu0 0.0
    %976 = vmatpush1.msra.mxu0 0.0
    %977 = vmatprep.subr.mxu0 0.0
    %978 = vmatpush1.msra.mxu0 0.0
    %979 = vmatprep.subr.mxu0 0.0
    %980 = vmatpush1.msra.mxu0 0.0
    %981 = vmatprep.subr.mxu0 0.0
    %982 = vmatpush1.msra.mxu0 0.0
    %983 = vmatprep.subr.mxu0 0.0
    %984 = vmatpush1.msra.mxu0 0.0
    %985 = vmatprep.subr.mxu0 0.0
    %986 = vmatpush1.msra.mxu0 0.0
    %987 = vmatprep.subr.mxu0 0.0
    %988 = vmatpush1.msra.mxu0 %v930
    %989 = vmatprep.subr.mxu0 0.0
    %990 = vmatpush1.msra.mxu0 %v929
    %991 = vmatprep.subr.mxu0 0.0
    %992 = vmatpush1.msra.mxu0 %v928
    %993 = vmatprep.subr.mxu0 0.0
    %994 = vmatpush1.msra.mxu0 %v927
    %995 = vmatprep.subr.mxu0 0.0
    %996 = vmatpush2.msra.mxu0 0.0
    %997 = vmatprep.subr.mxu0 0.0
    %998 = vmatpush2.msra.mxu0 0.0
    %999 = vmatprep.subr.mxu0 0.0
    %1000 = vmatpush2.msra.mxu0 0.0
    %1001 = vmatprep.subr.mxu0 0.0
    %1002 = vmatpush2.msra.mxu0 0.0
    %1003 = vmatprep.subr.mxu0 0.0
    %1004 = vmatpush2.msra.mxu0 0.0
    %1005 = vmatprep.subr.mxu0 0.0
    %1006 = vmatpush2.msra.mxu0 0.0
    %1007 = vmatprep.subr.mxu0 0.0
    %1008 = vmatpush2.msra.mxu0 0.0
    %1009 = vmatprep.subr.mxu0 0.0
    %1010 = vmatpush2.msra.mxu0 0.0
    %1011 = vmatprep.subr.mxu0 0.0
    %1012 = vmatpush2.msra.mxu0 0.0
    %1013 = vmatprep.subr.mxu0 0.0
    %1014 = vmatpush2.msra.mxu0 0.0
    %1015 = vmatprep.subr.mxu0 0.0
    %1016 = vmatpush2.msra.mxu0 0.0
    %1017 = vmatprep.subr.mxu0 0.0
    %1018 = vmatpush2.msra.mxu0 0.0
    %1019 = vmatprep.subr.mxu0 0.0
    %1020 = vmatpush2.msra.mxu0 0.0
    %1021 = vmatprep.subr.mxu0 0.0
    %1022 = vmatpush2.msra.mxu0 0.0
    %1023 = vmatprep.subr.mxu0 0.0
    %1024 = vmatpush2.msra.mxu0 0.0
    %1025 = vmatprep.subr.mxu0 0.0
    %1026 = vmatpush2.msra.mxu0 0.0
    %1027 = vmatprep.mubr.f32.mxu0 0.0
    %1028 = vmatmul.mubr.f32.gmra.mxu0 %v940
    %v1029 = vpop.f32.mrf.mxu0
    %v1030 = vadd.f32 %v936, %v1029
    %v1031 = vpop.f32.mrf.mxu0
    %1032 = vmatprep.mubr.f32.mxu0 0.0
    %1033 = vmatmul.mubr.f32.gmra.mxu0 %v943
    %v1034 = vpop.f32.mrf.mxu0
    %v1035 = vadd.f32 %v936, %v1034
    %v1036 = vpop.f32.mrf.mxu0
    %1037 = vmatprep.mubr.f32.mxu0 0.0
    %1038 = vmatmul.mubr.f32.gmra.mxu0 %v946
    %v1039 = vpop.f32.mrf.mxu0
    %v1040 = vadd.f32 %v936, %v1039
    %v1041 = vpop.f32.mrf.mxu0
    %1042 = vmatprep.mubr.f32.mxu0 0.0
    %1043 = vmatmul.mubr.f32.gmra.mxu0 %v949
    %v1044 = vpop.f32.mrf.mxu0
    %v1045 = vadd.f32 %v936, %v1044
    %v1046 = vpop.f32.mrf.mxu0
    %1047 = vmatprep.mubr.f32.mxu0 0.0
    %1048 = vmatmul.mubr.f32.gmra.mxu0 %v952
    %v1049 = vpop.f32.mrf.mxu0
    %v1050 = vadd.f32 %v936, %v1049
    %v1051 = vpop.f32.mrf.mxu0
    %1052 = vmatprep.mubr.f32.mxu0 0.0
    %1053 = vmatmul.mubr.f32.gmra.mxu0 %v955
    %v1054 = vpop.f32.mrf.mxu0
    %v1055 = vadd.f32 %v936, %v1054
    %v1056 = vpop.f32.mrf.mxu0
    %1057 = vmatprep.mubr.f32.mxu0 0.0
    %1058 = vmatmul.mubr.f32.gmra.mxu0 %v958
    %v1059 = vpop.f32.mrf.mxu0
    %v1060 = vadd.f32 %v936, %v1059
    %v1061 = vpop.f32.mrf.mxu0
    %1062 = vmatprep.mubr.f32.mxu0 0.0
    %1063 = vmatmul.mubr.f32.gmra.mxu0 %v961
    %v1064 = vpop.f32.mrf.mxu0
    %v1065 = vadd.f32 %v936, %v1064
    %v1066 = vpop.f32.mrf.mxu0
    %1067 = vdwg.mxu0
    %v1068 = vmul.f32 %v1030, 0.5
    %v1069 = vmul.f32 %v1035, 0.5
    %v1070 = vmul.f32 %v1040, 0.5
    %v1071 = vmul.f32 %v1045, 0.5
    %v1072 = vmul.f32 %v1050, 0.5
    %v1073 = vmul.f32 %v1055, 0.5
    %v1074 = vmul.f32 %v1060, 0.5
    %v1075 = vmul.f32 %v1065, 0.5
    %v1076 = vmul.f32 %v1030, 0.70710677
    %v1077 = vmul.f32 %v1035, 0.70710677
    %v1078 = vmul.f32 %v1040, 0.70710677
    %v1079 = vmul.f32 %v1045, 0.70710677
    %v1080 = vmul.f32 %v1050, 0.70710677
    %v1081 = vmul.f32 %v1055, 0.70710677
    %v1082 = vmul.f32 %v1060, 0.70710677
    %v1083 = vmul.f32 %v1065, 0.70710677
    %v1084 = vand.u32 2147483647, %v1076
    %v1085 = vand.u32 2147483647, %v1077
    %v1086 = vand.u32 2147483647, %v1078
    %v1087 = vand.u32 2147483647, %v1079
    %v1088 = vand.u32 2147483647, %v1080
    %v1089 = vand.u32 2147483647, %v1081
    %v1090 = vand.u32 2147483647, %v1082
    %v1091 = vand.u32 2147483647, %v1083
    %v1092 = vmul.f32 %v1084, 0.3275911
    %v1093 = vmul.f32 %v1085, 0.3275911
    %v1094 = vmul.f32 %v1086, 0.3275911
    %v1095 = vmul.f32 %v1087, 0.3275911
    %v1096 = vmul.f32 %v1088, 0.3275911
    %v1097 = vmul.f32 %v1089, 0.3275911
    %v1098 = vmul.f32 %v1090, 0.3275911
    %v1099 = vmul.f32 %v1091, 0.3275911
    %v1100 = vadd.f32 %v1092, 1.0
    %v1101 = vadd.f32 %v1093, 1.0
    %v1102 = vadd.f32 %v1094, 1.0
    %v1103 = vadd.f32 %v1095, 1.0
    %v1104 = vadd.f32 %v1096, 1.0
    %v1105 = vadd.f32 %v1097, 1.0
    %v1106 = vadd.f32 %v1098, 1.0
    %v1107 = vadd.f32 %v1099, 1.0
    %v1108 = vrcp.pop %v1100
    %v1109 = vmul.f32 1.0, %v1108
    %v1110 = vrcp.pop %v1101
    %v1111 = vmul.f32 1.0, %v1110
    %v1112 = vrcp.pop %v1102
    %v1113 = vmul.f32 1.0, %v1112
    %v1114 = vrcp.pop %v1103
    %v1115 = vmul.f32 1.0, %v1114
    %v1116 = vrcp.pop %v1104
    %v1117 = vmul.f32 1.0, %v1116
    %v1118 = vrcp.pop %v1105
    %v1119 = vmul.f32 1.0, %v1118
    %v1120 = vrcp.pop %v1106
    %v1121 = vmul.f32 1.0, %v1120
    %v1122 = vrcp.pop %v1107
    %v1123 = vmul.f32 1.0, %v1122
    %v1124 = vmul.f32 %v1109, 1.0614054
    %v1125 = vmul.f32 %v1111, 1.0614054
    %v1126 = vmul.f32 %v1113, 1.0614054
    %v1127 = vmul.f32 %v1115, 1.0614054
    %v1128 = vmul.f32 %v1117, 1.0614054
    %v1129 = vmul.f32 %v1119, 1.0614054
    %v1130 = vmul.f32 %v1121, 1.0614054
    %v1131 = vmul.f32 %v1123, 1.0614054
    %v1132 = vadd.f32 %v1124, -1.4531521
    %v1133 = vadd.f32 %v1125, -1.4531521
    %v1134 = vadd.f32 %v1126, -1.4531521
    %v1135 = vadd.f32 %v1127, -1.4531521
    %v1136 = vadd.f32 %v1128, -1.4531521
    %v1137 = vadd.f32 %v1129, -1.4531521
    %v1138 = vadd.f32 %v1130, -1.4531521
    %v1139 = vadd.f32 %v1131, -1.4531521
    %v1140 = vmul.f32 %v1132, %v1109
    %v1141 = vmul.f32 %v1133, %v1111
    %v1142 = vmul.f32 %v1134, %v1113
    %v1143 = vmul.f32 %v1135, %v1115
    %v1144 = vmul.f32 %v1136, %v1117
    %v1145 = vmul.f32 %v1137, %v1119
    %v1146 = vmul.f32 %v1138, %v1121
    %v1147 = vmul.f32 %v1139, %v1123
    %v1148 = vadd.f32 %v1140, 1.4214138
    %v1149 = vadd.f32 %v1141, 1.4214138
    %v1150 = vadd.f32 %v1142, 1.4214138
    %v1151 = vadd.f32 %v1143, 1.4214138
    %v1152 = vadd.f32 %v1144, 1.4214138
    %v1153 = vadd.f32 %v1145, 1.4214138
    %v1154 = vadd.f32 %v1146, 1.4214138
    %v1155 = vadd.f32 %v1147, 1.4214138
    %v1156 = vmul.f32 %v1148, %v1109
    %v1157 = vmul.f32 %v1149, %v1111
    %v1158 = vmul.f32 %v1150, %v1113
    %v1159 = vmul.f32 %v1151, %v1115
    %v1160 = vmul.f32 %v1152, %v1117
    %v1161 = vmul.f32 %v1153, %v1119
    %v1162 = vmul.f32 %v1154, %v1121
    %v1163 = vmul.f32 %v1155, %v1123
    %v1164 = vadd.f32 %v1156, -0.28449672
    %v1165 = vadd.f32 %v1157, -0.28449672
    %v1166 = vadd.f32 %v1158, -0.28449672
    %v1167 = vadd.f32 %v1159, -0.28449672
    %v1168 = vadd.f32 %v1160, -0.28449672
    %v1169 = vadd.f32 %v1161, -0.28449672
    %v1170 = vadd.f32 %v1162, -0.28449672
    %v1171 = vadd.f32 %v1163, -0.28449672
    %v1172 = vmul.f32 %v1164, %v1109
    %v1173 = vmul.f32 %v1165, %v1111
    %v1174 = vmul.f32 %v1166, %v1113
    %v1175 = vmul.f32 %v1167, %v1115
    %v1176 = vmul.f32 %v1168, %v1117
    %v1177 = vmul.f32 %v1169, %v1119
    %v1178 = vmul.f32 %v1170, %v1121
    %v1179 = vmul.f32 %v1171, %v1123
    %v1180 = vadd.f32 %v1172, 0.2548296
    %v1181 = vadd.f32 %v1173, 0.2548296
    %v1182 = vadd.f32 %v1174, 0.2548296
    %v1183 = vadd.f32 %v1175, 0.2548296
    %v1184 = vadd.f32 %v1176, 0.2548296
    %v1185 = vadd.f32 %v1177, 0.2548296
    %v1186 = vadd.f32 %v1178, 0.2548296
    %v1187 = vadd.f32 %v1179, 0.2548296
    %v1188 = vmul.f32 %v1180, %v1109
    %v1189 = vmul.f32 %v1181, %v1111
    %v1190 = vmul.f32 %v1182, %v1113
    %v1191 = vmul.f32 %v1183, %v1115
    %v1192 = vmul.f32 %v1184, %v1117
    %v1193 = vmul.f32 %v1185, %v1119
    %v1194 = vmul.f32 %v1186, %v1121
    %v1195 = vmul.f32 %v1187, %v1123
    %v1196 = vsub.f32 0.0, %v1084
    %v1197 = vsub.f32 0.0, %v1085
    %v1198 = vsub.f32 0.0, %v1086
    %v1199 = vsub.f32 0.0, %v1087
    %v1200 = vsub.f32 0.0, %v1088
    %v1201 = vsub.f32 0.0, %v1089
    %v1202 = vsub.f32 0.0, %v1090
    %v1203 = vsub.f32 0.0, %v1091
    %v1204 = vmul.f32 %v1196, %v1084
    %v1205 = vmul.f32 %v1197, %v1085
    %v1206 = vmul.f32 %v1198, %v1086
    %v1207 = vmul.f32 %v1199, %v1087
    %v1208 = vmul.f32 %v1200, %v1088
    %v1209 = vmul.f32 %v1201, %v1089
    %v1210 = vmul.f32 %v1202, %v1090
    %v1211 = vmul.f32 %v1203, %v1091
    %v1212 = vmul.f32 %v1204, 1.442695
    %v1213 = vpow.pop %v1212
    %v1214 = vmul.f32 %v1205, 1.442695
    %v1215 = vpow.pop %v1214
    %v1216 = vmul.f32 %v1206, 1.442695
    %v1217 = vpow.pop %v1216
    %v1218 = vmul.f32 %v1207, 1.442695
    %v1219 = vpow.pop %v1218
    %v1220 = vmul.f32 %v1208, 1.442695
    %v1221 = vpow.pop %v1220
    %v1222 = vmul.f32 %v1209, 1.442695
    %v1223 = vpow.pop %v1222
    %v1224 = vmul.f32 %v1210, 1.442695
    %v1225 = vpow.pop %v1224
    %v1226 = vmul.f32 %v1211, 1.442695
    %v1227 = vpow.pop %v1226
    %v1228 = vmul.f32 %v1188, %v1213
    %v1229 = vmul.f32 %v1189, %v1215
    %v1230 = vmul.f32 %v1190, %v1217
    %v1231 = vmul.f32 %v1191, %v1219
    %v1232 = vmul.f32 %v1192, %v1221
    %v1233 = vmul.f32 %v1193, %v1223
    %v1234 = vmul.f32 %v1194, %v1225
    %v1235 = vmul.f32 %v1195, %v1227
    %v1236 = vsub.f32 1.0, %v1228
    %v1237 = vsub.f32 1.0, %v1229
    %v1238 = vsub.f32 1.0, %v1230
    %v1239 = vsub.f32 1.0, %v1231
    %v1240 = vsub.f32 1.0, %v1232
    %v1241 = vsub.f32 1.0, %v1233
    %v1242 = vsub.f32 1.0, %v1234
    %v1243 = vsub.f32 1.0, %v1235
    %vm1244 = vcmp.lt.f32.partialorder %v1076, 0.0
    %vm1245 = vcmp.lt.f32.partialorder %v1077, 0.0
    %vm1246 = vcmp.lt.f32.partialorder %v1078, 0.0
    %vm1247 = vcmp.lt.f32.partialorder %v1079, 0.0
    %vm1248 = vcmp.lt.f32.partialorder %v1080, 0.0
    %vm1249 = vcmp.lt.f32.partialorder %v1081, 0.0
    %vm1250 = vcmp.lt.f32.partialorder %v1082, 0.0
    %vm1251 = vcmp.lt.f32.partialorder %v1083, 0.0
    %v1252 = vsub.f32 0.0, %v1236
    %v1253 = vsub.f32 0.0, %v1237
    %v1254 = vsub.f32 0.0, %v1238
    %v1255 = vsub.f32 0.0, %v1239
    %v1256 = vsub.f32 0.0, %v1240
    %v1257 = vsub.f32 0.0, %v1241
    %v1258 = vsub.f32 0.0, %v1242
    %v1259 = vsub.f32 0.0, %v1243
    %v1260 = vsel %vm1244, %v1252, %v1236
    %v1261 = vsel %vm1245, %v1253, %v1237
    %v1262 = vsel %vm1246, %v1254, %v1238
    %v1263 = vsel %vm1247, %v1255, %v1239
    %v1264 = vsel %vm1248, %v1256, %v1240
    %v1265 = vsel %vm1249, %v1257, %v1241
    %v1266 = vsel %vm1250, %v1258, %v1242
    %v1267 = vsel %vm1251, %v1259, %v1243
    %v1268 = vadd.f32 %v1260, 1.0
    %v1269 = vadd.f32 %v1261, 1.0
    %v1270 = vadd.f32 %v1262, 1.0
    %v1271 = vadd.f32 %v1263, 1.0
    %v1272 = vadd.f32 %v1264, 1.0
    %v1273 = vadd.f32 %v1265, 1.0
    %v1274 = vadd.f32 %v1266, 1.0
    %v1275 = vadd.f32 %v1267, 1.0
    %v1276 = vmul.f32 %v1068, %v1268
    %v1277 = vmul.f32 %v1069, %v1269
    %v1278 = vmul.f32 %v1070, %v1270
    %v1279 = vmul.f32 %v1071, %v1271
    %v1280 = vmul.f32 %v1072, %v1272
    %v1281 = vmul.f32 %v1073, %v1273
    %v1282 = vmul.f32 %v1074, %v1274
    %v1283 = vmul.f32 %v1075, %v1275
    %v1284 = vld [vmem:[%s9] sm:$0xff]
    %v1285 = vld [vmem:[%s9 + $0x8] sm:$0xff]
    %v1286 = vld [vmem:[%s10] sm:$0x1]
    %v1288 = vlaneseq
    %v1289 = vshrl.u32 %v1288, 7
    %v1290 = vsub.s32 0, %v1289
    %v1291 = vrot.slane %v1286, %v1290
    %vm1293 = vcmask 130048
    %v1295 = vsel %vm1293, %v1276, 0
    %v1298 = vsel %vm1293, %v1277, 0
    %v1301 = vsel %vm1293, %v1278, 0
    %v1304 = vsel %vm1293, %v1279, 0
    %v1307 = vsel %vm1293, %v1280, 0
    %v1310 = vsel %vm1293, %v1281, 0
    %v1313 = vsel %vm1293, %v1282, 0
    %v1316 = vsel %vm1293, %v1283, 0
    %1318 = vmatprep.subr.mxu0 0.0
    %1319 = vmatpush1.msra.mxu0 0.0
    %1320 = vmatprep.subr.mxu0 0.0
    %1321 = vmatpush1.msra.mxu0 0.0
    %1322 = vmatprep.subr.mxu0 0.0
    %1323 = vmatpush1.msra.mxu0 0.0
    %1324 = vmatprep.subr.mxu0 0.0
    %1325 = vmatpush1.msra.mxu0 0.0
    %1326 = vmatprep.subr.mxu0 0.0
    %1327 = vmatpush1.msra.mxu0 0.0
    %1328 = vmatprep.subr.mxu0 0.0
    %1329 = vmatpush1.msra.mxu0 0.0
    %1330 = vmatprep.subr.mxu0 0.0
    %1331 = vmatpush1.msra.mxu0 0.0
    %1332 = vmatprep.subr.mxu0 0.0
    %1333 = vmatpush1.msra.mxu0 0.0
    %1334 = vmatprep.subr.mxu0 0.0
    %1335 = vmatpush1.msra.mxu0 0.0
    %1336 = vmatprep.subr.mxu0 0.0
    %1337 = vmatpush1.msra.mxu0 0.0
    %1338 = vmatprep.subr.mxu0 0.0
    %1339 = vmatpush1.msra.mxu0 0.0
    %1340 = vmatprep.subr.mxu0 0.0
    %1341 = vmatpush1.msra.mxu0 0.0
    %1342 = vmatprep.subr.mxu0 0.0
    %1343 = vmatpush1.msra.mxu0 0.0
    %1344 = vmatprep.subr.mxu0 0.0
    %1345 = vmatpush1.msra.mxu0 0.0
    %1346 = vmatprep.subr.mxu0 0.0
    %1347 = vmatpush1.msra.mxu0 %v1285
    %1348 = vmatprep.subr.mxu0 0.0
    %1349 = vmatpush1.msra.mxu0 %v1284
    %1350 = vmatprep.subr.mxu0 0.0
    %1351 = vmatpush2.msra.mxu0 0.0
    %1352 = vmatprep.subr.mxu0 0.0
    %1353 = vmatpush2.msra.mxu0 0.0
    %1354 = vmatprep.subr.mxu0 0.0
    %1355 = vmatpush2.msra.mxu0 0.0
    %1356 = vmatprep.subr.mxu0 0.0
    %1357 = vmatpush2.msra.mxu0 0.0
    %1358 = vmatprep.subr.mxu0 0.0
    %1359 = vmatpush2.msra.mxu0 0.0
    %1360 = vmatprep.subr.mxu0 0.0
    %1361 = vmatpush2.msra.mxu0 0.0
    %1362 = vmatprep.subr.mxu0 0.0
    %1363 = vmatpush2.msra.mxu0 0.0
    %1364 = vmatprep.subr.mxu0 0.0
    %1365 = vmatpush2.msra.mxu0 0.0
    %1366 = vmatprep.subr.mxu0 0.0
    %1367 = vmatpush2.msra.mxu0 0.0
    %1368 = vmatprep.subr.mxu0 0.0
    %1369 = vmatpush2.msra.mxu0 0.0
    %1370 = vmatprep.subr.mxu0 0.0
    %1371 = vmatpush2.msra.mxu0 0.0
    %1372 = vmatprep.subr.mxu0 0.0
    %1373 = vmatpush2.msra.mxu0 0.0
    %1374 = vmatprep.subr.mxu0 0.0
    %1375 = vmatpush2.msra.mxu0 0.0
    %1376 = vmatprep.subr.mxu0 0.0
    %1377 = vmatpush2.msra.mxu0 0.0
    %1378 = vmatprep.subr.mxu0 0.0
    %1379 = vmatpush2.msra.mxu0 0.0
    %1380 = vmatprep.subr.mxu0 0.0
    %1381 = vmatpush2.msra.mxu0 0.0
    %1382 = vmatprep.mubr.f32.mxu0 0.0
    %1383 = vmatmul.mubr.f32.gmra.mxu0 %v1295
    %v1384 = vpop.f32.mrf.mxu0
    %v1385 = vadd.f32 %v1291, %v1384
    %v1386 = vpop.f32.mrf.mxu0
    %1387 = vmatprep.mubr.f32.mxu0 0.0
    %1388 = vmatmul.mubr.f32.gmra.mxu0 %v1298
    %v1389 = vpop.f32.mrf.mxu0
    %v1390 = vadd.f32 %v1291, %v1389
    %v1391 = vpop.f32.mrf.mxu0
    %1392 = vmatprep.mubr.f32.mxu0 0.0
    %1393 = vmatmul.mubr.f32.gmra.mxu0 %v1301
    %v1394 = vpop.f32.mrf.mxu0
    %v1395 = vadd.f32 %v1291, %v1394
    %v1396 = vpop.f32.mrf.mxu0
    %1397 = vmatprep.mubr.f32.mxu0 0.0
    %1398 = vmatmul.mubr.f32.gmra.mxu0 %v1304
    %v1399 = vpop.f32.mrf.mxu0
    %v1400 = vadd.f32 %v1291, %v1399
    %v1401 = vpop.f32.mrf.mxu0
    %1402 = vmatprep.mubr.f32.mxu0 0.0
    %1403 = vmatmul.mubr.f32.gmra.mxu0 %v1307
    %v1404 = vpop.f32.mrf.mxu0
    %v1405 = vadd.f32 %v1291, %v1404
    %v1406 = vpop.f32.mrf.mxu0
    %1407 = vmatprep.mubr.f32.mxu0 0.0
    %1408 = vmatmul.mubr.f32.gmra.mxu0 %v1310
    %v1409 = vpop.f32.mrf.mxu0
    %v1410 = vadd.f32 %v1291, %v1409
    %v1411 = vpop.f32.mrf.mxu0
    %1412 = vmatprep.mubr.f32.mxu0 0.0
    %1413 = vmatmul.mubr.f32.gmra.mxu0 %v1313
    %v1414 = vpop.f32.mrf.mxu0
    %v1415 = vadd.f32 %v1291, %v1414
    %v1416 = vpop.f32.mrf.mxu0
    %1417 = vmatprep.mubr.f32.mxu0 0.0
    %1418 = vmatmul.mubr.f32.gmra.mxu0 %v1316
    %v1419 = vpop.f32.mrf.mxu0
    %v1420 = vadd.f32 %v1291, %v1419
    %v1421 = vpop.f32.mrf.mxu0
    %1422 = vdwg.mxu0
    %1423 = vmax.xlane.f32.xlu0 %v1385
    %v1424 = vpop.xlane.xlu0 %1423
    %1425 = vmax.xlane.f32.xlu0 %v1390
    %v1426 = vpop.xlane.xlu0 %1425
    %1427 = vmax.xlane.f32.xlu0 %v1395
    %v1428 = vpop.xlane.xlu0 %1427
    %1429 = vmax.xlane.f32.xlu0 %v1400
    %v1430 = vpop.xlane.xlu0 %1429
    %1431 = vmax.xlane.f32.xlu0 %v1405
    %v1432 = vpop.xlane.xlu0 %1431
    %1433 = vmax.xlane.f32.xlu0 %v1410
    %v1434 = vpop.xlane.xlu0 %1433
    %1435 = vmax.xlane.f32.xlu0 %v1415
    %v1436 = vpop.xlane.xlu0 %1435
    %1437 = vmax.xlane.f32.xlu0 %v1420
    %v1438 = vpop.xlane.xlu0 %1437
    %v1439 = vsub.f32 %v1385, %v1424
    %v1440 = vsub.f32 %v1390, %v1426
    %v1441 = vsub.f32 %v1395, %v1428
    %v1442 = vsub.f32 %v1400, %v1430
    %v1443 = vsub.f32 %v1405, %v1432
    %v1444 = vsub.f32 %v1410, %v1434
    %v1445 = vsub.f32 %v1415, %v1436
    %v1446 = vsub.f32 %v1420, %v1438
    %v1447 = vmul.f32 %v1439, 1.442695
    %v1448 = vpow.pop %v1447
    %v1449 = vmul.f32 %v1440, 1.442695
    %v1450 = vpow.pop %v1449
    %v1451 = vmul.f32 %v1441, 1.442695
    %v1452 = vpow.pop %v1451
    %v1453 = vmul.f32 %v1442, 1.442695
    %v1454 = vpow.pop %v1453
    %v1455 = vmul.f32 %v1443, 1.442695
    %v1456 = vpow.pop %v1455
    %v1457 = vmul.f32 %v1444, 1.442695
    %v1458 = vpow.pop %v1457
    %v1459 = vmul.f32 %v1445, 1.442695
    %v1460 = vpow.pop %v1459
    %v1461 = vmul.f32 %v1446, 1.442695
    %v1462 = vpow.pop %v1461
    %1463 = vadd.xlane.f32.xlu0 %v1448
    %v1464 = vpop.xlane.xlu0 %1463
    %1465 = vadd.xlane.f32.xlu0 %v1450
    %v1466 = vpop.xlane.xlu0 %1465
    %1467 = vadd.xlane.f32.xlu0 %v1452
    %v1468 = vpop.xlane.xlu0 %1467
    %1469 = vadd.xlane.f32.xlu0 %v1454
    %v1470 = vpop.xlane.xlu0 %1469
    %1471 = vadd.xlane.f32.xlu0 %v1456
    %v1472 = vpop.xlane.xlu0 %1471
    %1473 = vadd.xlane.f32.xlu0 %v1458
    %v1474 = vpop.xlane.xlu0 %1473
    %1475 = vadd.xlane.f32.xlu0 %v1460
    %v1476 = vpop.xlane.xlu0 %1475
    %1477 = vadd.xlane.f32.xlu0 %v1462
    %v1478 = vpop.xlane.xlu0 %1477
    %v1479 = vlog2.pop %v1464
    %v1480 = vmul.f32 %v1479, 0.6931472
    %v1481 = vlog2.pop %v1466
    %v1482 = vmul.f32 %v1481, 0.6931472
    %v1483 = vlog2.pop %v1468
    %v1484 = vmul.f32 %v1483, 0.6931472
    %v1485 = vlog2.pop %v1470
    %v1486 = vmul.f32 %v1485, 0.6931472
    %v1487 = vlog2.pop %v1472
    %v1488 = vmul.f32 %v1487, 0.6931472
    %v1489 = vlog2.pop %v1474
    %v1490 = vmul.f32 %v1489, 0.6931472
    %v1491 = vlog2.pop %v1476
    %v1492 = vmul.f32 %v1491, 0.6931472
    %v1493 = vlog2.pop %v1478
    %v1494 = vmul.f32 %v1493, 0.6931472
    %v1495 = vadd.f32 %v1424, %v1480
    %v1496 = vadd.f32 %v1426, %v1482
    %v1497 = vadd.f32 %v1428, %v1484
    %v1498 = vadd.f32 %v1430, %v1486
    %v1499 = vadd.f32 %v1432, %v1488
    %v1500 = vadd.f32 %v1434, %v1490
    %v1501 = vadd.f32 %v1436, %v1492
    %v1502 = vadd.f32 %v1438, %v1494
    %v1503 = vsub.f32 %v1385, %v1495
    %v1504 = vsub.f32 %v1390, %v1496
    %v1505 = vsub.f32 %v1395, %v1497
    %v1506 = vsub.f32 %v1400, %v1498
    %v1507 = vsub.f32 %v1405, %v1499
    %v1508 = vsub.f32 %v1410, %v1500
    %v1509 = vsub.f32 %v1415, %v1501
    %v1510 = vsub.f32 %v1420, %v1502
    %1511 = vst [vmem:[#allocation2] sm:$0xff] %v1503
    %1512 = vst [vmem:[#allocation2 + $0x8] sm:$0xff] %v1504
    %1513 = vst [vmem:[#allocation2 + $0x10] sm:$0xff] %v1505
    %1514 = vst [vmem:[#allocation2 + $0x18] sm:$0xff] %v1506
    %1515 = vst [vmem:[#allocation2 + $0x20] sm:$0xff] %v1507
    %1516 = vst [vmem:[#allocation2 + $0x28] sm:$0xff] %v1508
    %1517 = vst [vmem:[#allocation2 + $0x30] sm:$0xff] %v1509
    %1518 = vst [vmem:[#allocation2 + $0x38] sm:$0xff] %v1510
    // Predicated region
    $region46: #{tpu_custom_call.1} parent=1 // pred_check
      _
    $region47: #{tpu_custom_call.1} parent=1 // pred_check_branch
      %1520 = sbr.rel (0) target = $region49
    $region48: #{tpu_custom_call.1} parent=1 // pred_region
      %s1522 = ssub.s32 1024, 1024
      %1523 = vsyncadd [#allocation3], %s1522
      %s1524 = sshll.u32 [#allocation2], 4
      %s1525 = int_to_ptr.vmem [resolvable:$true] %s1524
      %1530 = dma.vmem_to_hbm [thread:$0]  %s1525, 1024, %s11, [#allocation3], 128, 128, 8
    $region49: #{tpu_custom_call.1} parent=1 // pred_fallthru
      _
    // Predicated region
    $region50: #{tpu_custom_call.1} parent=1 // pred_check
      _
    $region51: #{tpu_custom_call.1} parent=1 // pred_check_branch
      %1532 = sbr.rel (0) target = $region53
    $region52: #{tpu_custom_call.1} parent=1 // pred_region
      %1533 = dma.done [#allocation3], 1024
    $region53: #{tpu_custom_call.1} parent=1 // pred_fallthru
      _
    %1534 = vsyncpa [#allocation3], 1

</llo_original>
